<compile_context>
chip_gen: v7x
topology: tpu7x:2x2x1
jax: 0.10.0
libtpu: 0.0.40
codegen_flags: <defaults>
</compile_context>

<pallas_src>
import math

import jax
import jax.numpy as jnp
from jax import lax
from jax.experimental import pallas as pl
from jax.experimental.pallas import tpu as pltpu

# ---- small problem sizes (seq-first, matching nn.LSTM default) --------------
SEQ   = 8      # sequence length
BATCH = 2      # batch size
DIN   = 16     # input_dim
HID   = 32     # hidden_dim
DOUT  = 8      # output_dim


# ---------------------------- Pallas kernel ---------------------------------
def bilstm_kernel(x2_ref, w_ih_ref, b_ref, w_hh_ref, w_fc_ref, b_fc_ref, out_ref):
    """Whole BiLSTM forward in one grid step, state kept in vregs.

    x2_ref   : (SEQ*BATCH, 2*DIN)  rows t*B..t*B+B = [x_t | x_{SEQ-1-t}]
    w_ih_ref : (2*DIN, 8*HID)      block-diag input weights, gate-interleaved cols
                                   (g-gate columns pre-scaled by 2)
    b_ref    : (1, 8*HID)          folded b_ih + b_hh (both dirs, g cols x2)
    w_hh_ref : (2*HID, 8*HID)      block-diag hidden weights (g cols x2)
    w_fc_ref : (2*HID, DOUT)       fused fc weight ([fwd | rev] feature rows)
    b_fc_ref : (1, DOUT)
    out_ref  : (SEQ*BATCH, DOUT)
    """
    # Fused input projection: both directions, every timestep, one MXU matmul.
    xproj = (jnp.dot(x2_ref[...], w_ih_ref[...],
                     preferred_element_type=jnp.float32) + b_ref[...])

    w_hh = w_hh_ref[...]                                   # (2*HID, 8*HID)
    c = jnp.zeros((BATCH, 2 * HID), jnp.float32)
    h = jnp.zeros((BATCH, 2 * HID), jnp.float32)

    h_fwd = []   # forward-direction hidden at step t  (output time t)
    h_rev = []   # reverse-direction hidden at step t  (output time SEQ-1-t)

    for t in range(SEQ):                                   # static unrolled loop
        xg = xproj[t * BATCH:(t + 1) * BATCH, :]           # static slice
        if t == 0:
            g = xg                                         # h0 == 0: skip matmul
        else:
            g = xg + jnp.dot(h, w_hh, preferred_element_type=jnp.float32)
        # Gate column layout: [i | f | g | o], each 2*HID wide ([fwd | rev]).
        # g-gate columns were pre-scaled by 2 on the host, so a single
        # full-width sigmoid covers all gates; tanh(z) = 2*sigmoid(2z) - 1.
        s = jax.nn.sigmoid(g)                              # one EUP pass, full width
        i_g = s[:, 0 * HID:2 * HID]
        f_g = s[:, 2 * HID:4 * HID]
        c_g = 2.0 * s[:, 4 * HID:6 * HID] - 1.0            # == tanh(raw g-gate)
        o_g = s[:, 6 * HID:8 * HID]
        c = i_g * c_g if t == 0 else f_g * c + i_g * c_g
        h = o_g * jnp.tanh(c)
        h_fwd.append(h[:, 0:HID])
        h_rev.append(h[:, HID:2 * HID])

    # Reassemble in output time order (static, register-resident):
    #   output time t  <-  [ h_fwd[t] | h_rev[SEQ-1-t] ]
    lstm_out = jnp.concatenate(
        [jnp.concatenate([h_fwd[t], h_rev[SEQ - 1 - t]], axis=1)
         for t in range(SEQ)],
        axis=0)                                            # (SEQ*BATCH, 2*HID)

    # Fused output Linear: one MXU pass.
    out_ref[...] = (jnp.dot(lstm_out, w_fc_ref[...],
                            preferred_element_type=jnp.float32) + b_fc_ref[...])


# ------------------------------ wrapper --------------------------------------
def _prepare_weights(params):
    """Host-side folding / fusion of the PyTorch-layout LSTM + fc parameters."""
    (w_ih_f, w_hh_f, b_ih_f, b_hh_f,
     w_ih_r, w_hh_r, b_ih_r, b_hh_r, w_fc, b_fc) = params

    w_ih_blk = jnp.zeros((2 * DIN, 8 * HID), jnp.float32)
    w_hh_blk = jnp.zeros((2 * HID, 8 * HID), jnp.float32)
    b_cat = jnp.zeros((1, 8 * HID), jnp.float32)
    for gi in range(4):                       # PyTorch gate order: i, f, g, o
        cf = slice(gi * 2 * HID, gi * 2 * HID + HID)            # forward columns
        cr = slice(gi * 2 * HID + HID, gi * 2 * HID + 2 * HID)  # reverse columns
        rg = slice(gi * HID, (gi + 1) * HID)                    # PyTorch gate rows
        w_ih_blk = w_ih_blk.at[0:DIN, cf].set(w_ih_f[rg, :].T)
        w_ih_blk = w_ih_blk.at[DIN:2 * DIN, cr].set(w_ih_r[rg, :].T)
        w_hh_blk = w_hh_blk.at[0:HID, cf].set(w_hh_f[rg, :].T)
        w_hh_blk = w_hh_blk.at[HID:2 * HID, cr].set(w_hh_r[rg, :].T)
        b_cat = b_cat.at[0, cf].set(b_ih_f[rg] + b_hh_f[rg])    # fold both biases
        b_cat = b_cat.at[0, cr].set(b_ih_r[rg] + b_hh_r[rg])

    # Pre-scale the g-gate (cell candidate) columns by 2 so the kernel can use
    # a single full-width sigmoid:  tanh(z) = 2*sigmoid(2z) - 1.
    gsl = slice(4 * HID, 6 * HID)
    w_ih_blk = w_ih_blk.at[:, gsl].multiply(2.0)
    w_hh_blk = w_hh_blk.at[:, gsl].multiply(2.0)
    b_cat = b_cat.at[:, gsl].multiply(2.0)

    w_fc2 = w_fc.T                           # (2*HID, DOUT), rows = [fwd | rev]
    b_fc2 = b_fc.reshape(1, DOUT)
    return w_ih_blk, b_cat, w_hh_blk, w_fc2, b_fc2


def bilstm_forward(x, params):
    w_ih_blk, b_cat, w_hh_blk, w_fc2, b_fc2 = _prepare_weights(params)

    # Row block t of x2 holds [x_t | x_{SEQ-1-t}] so one matmul projects both
    # directions for every timestep.
    x2 = jnp.concatenate([x, x[::-1]], axis=-1).reshape(SEQ * BATCH, 2 * DIN)

    out2d = pl.pallas_call(
        bilstm_kernel,
        out_shape=jax.ShapeDtypeStruct((SEQ * BATCH, DOUT), jnp.float32),
        grid_spec=pltpu.PrefetchScalarGridSpec(
            num_scalar_prefetch=0,
            grid=(1,),
            in_specs=[
                pl.BlockSpec((SEQ * BATCH, 2 * DIN), lambda i: (0, 0)),  # x2
                pl.BlockSpec((2 * DIN, 8 * HID), lambda i: (0, 0)),      # W_ih
                pl.BlockSpec((1, 8 * HID), lambda i: (0, 0)),            # bias
                pl.BlockSpec((2 * HID, 8 * HID), lambda i: (0, 0)),      # W_hh
                pl.BlockSpec((2 * HID, DOUT), lambda i: (0, 0)),         # fc W
                pl.BlockSpec((1, DOUT), lambda i: (0, 0)),               # fc b
            ],
            out_specs=pl.BlockSpec((SEQ * BATCH, DOUT), lambda i: (0, 0)),
            scratch_shapes=[],
        ),
        compiler_params=pltpu.CompilerParams(
            dimension_semantics=("arbitrary",)),
    )(x2, w_ih_blk, b_cat, w_hh_blk, w_fc2, b_fc2)

    return out2d.reshape(SEQ, BATCH, DOUT)


# ----------------------- deterministic parameter init ------------------------
def init_params(key):
    ks = jax.random.split(key, 10)
    s = 1.0 / math.sqrt(HID)
    u = lambda k, shape: jax.random.uniform(k, shape, jnp.float32, -s, s)
    w_ih_f = u(ks[0], (4 * HID, DIN)); w_hh_f = u(ks[1], (4 * HID, HID))
    b_ih_f = u(ks[2], (4 * HID,));     b_hh_f = u(ks[3], (4 * HID,))
    w_ih_r = u(ks[4], (4 * HID, DIN)); w_hh_r = u(ks[5], (4 * HID, HID))
    b_ih_r = u(ks[6], (4 * HID,));     b_hh_r = u(ks[7], (4 * HID,))
    bf = 1.0 / math.sqrt(2 * HID)
    w_fc = jax.random.uniform(ks[8], (DOUT, 2 * HID), jnp.float32, -bf, bf)
    b_fc = jax.random.uniform(ks[9], (DOUT,), jnp.float32, -bf, bf)
    return (w_ih_f, w_hh_f, b_ih_f, b_hh_f,
            w_ih_r, w_hh_r, b_ih_r, b_hh_r, w_fc, b_fc)


# -------------------------- pure-JAX reference -------------------------------
def bilstm_reference(x, params):
    (w_ih_f, w_hh_f, b_ih_f, b_hh_f,
     w_ih_r, w_hh_r, b_ih_r, b_hh_r, w_fc, b_fc) = params
    hp = lax.Precision.HIGHEST

    def run(xseq, w_ih, w_hh, b_ih, b_hh):
        def step(carry, xt):
            h, c = carry
            g = (jnp.dot(xt, w_ih.T, precision=hp) + b_ih
                 + jnp.dot(h, w_hh.T, precision=hp) + b_hh)
            i = jax.nn.sigmoid(g[:, 0:HID])
            f = jax.nn.sigmoid(g[:, HID:2 * HID])
            gg = jnp.tanh(g[:, 2 * HID:3 * HID])
            o = jax.nn.sigmoid(g[:, 3 * HID:4 * HID])
            c = f * c + i * gg
            h = o * jnp.tanh(c)
            return (h, c), h
        init = (jnp.zeros((xseq.shape[1], HID), jnp.float32),
                jnp.zeros((xseq.shape[1], HID), jnp.float32))
        _, hs = lax.scan(step, init, xseq)
        return hs

    h_f = run(x, w_ih_f, w_hh_f, b_ih_f, b_hh_f)
    h_r = run(x[::-1], w_ih_r, w_hh_r, b_ih_r, b_hh_r)[::-1]
    lstm_out = jnp.concatenate([h_f, h_r], axis=-1)          # (SEQ, BATCH, 2H)
    return jnp.dot(lstm_out, w_fc.T, precision=hp) + b_fc


if __name__ == "__main__":
    key = jax.random.PRNGKey(0)
    kx, kp = jax.random.split(key)
    x = jax.random.normal(kx, (SEQ, BATCH, DIN), jnp.float32)
    params = init_params(kp)

    out = jax.jit(bilstm_forward)(x, params)
    jax.block_until_ready(out)

    ref = bilstm_reference(x, params)
    assert out.shape == (SEQ, BATCH, DOUT)
    err = float(jnp.max(jnp.abs(out - ref)))
    assert err < 2e-3, err
    print("KERNEL_OK")
</pallas_src>

<mosaic_0001>
module attributes {stable_mosaic.version = 11 : i64} {
  func.func @bilstm_kernel(%arg0: i32, %arg1: memref<16x32xf32, #tpu.memory_space<vmem>>, %arg2: memref<32x256xf32, #tpu.memory_space<vmem>>, %arg3: memref<1x256xf32, #tpu.memory_space<vmem>>, %arg4: memref<64x256xf32, #tpu.memory_space<vmem>>, %arg5: memref<64x8xf32, #tpu.memory_space<vmem>>, %arg6: memref<1x8xf32, #tpu.memory_space<vmem>>, %arg7: memref<16x8xf32, #tpu.memory_space<vmem>>) attributes {dimension_semantics = [#tpu.dimension_semantics<arbitrary>], iteration_bounds = array<i64: 1>, scalar_prefetch = 0 : i64, scratch_operands = 0 : i64, tpu.core_type = #tpu.core_type<tc>, window_params = [{pipeline_mode = #tpu.pipeline_mode<synchronous>, transform_indices = @transform_0, window_bounds = array<i64: 16, 32>}, {pipeline_mode = #tpu.pipeline_mode<synchronous>, transform_indices = @transform_1, window_bounds = array<i64: 32, 256>}, {pipeline_mode = #tpu.pipeline_mode<synchronous>, transform_indices = @transform_2, window_bounds = array<i64: 1, 256>}, {pipeline_mode = #tpu.pipeline_mode<synchronous>, transform_indices = @transform_3, window_bounds = array<i64: 64, 256>}, {pipeline_mode = #tpu.pipeline_mode<synchronous>, transform_indices = @transform_4, window_bounds = array<i64: 64, 8>}, {pipeline_mode = #tpu.pipeline_mode<synchronous>, transform_indices = @transform_5, window_bounds = array<i64: 1, 8>}, {pipeline_mode = #tpu.pipeline_mode<synchronous>, transform_indices = @transform_6, window_bounds = array<i64: 16, 8>}]} {
    %c0 = arith.constant 0 : index
    %c0_0 = arith.constant 0 : index
    %0 = vector.load %arg1[%c0, %c0_0] : memref<16x32xf32, #tpu.memory_space<vmem>>, vector<16x32xf32>
    %c0_1 = arith.constant 0 : index
    %c0_2 = arith.constant 0 : index
    %1 = vector.load %arg2[%c0_1, %c0_2] : memref<32x256xf32, #tpu.memory_space<vmem>>, vector<32x256xf32>
    %cst = arith.constant dense<0.000000e+00> : vector<16x256xf32>
    %2 = tpu.matmul %0, %1, %cst {dimension_numbers = #tpu.dot_dimension_numbers<[1], [0], [0], [1], [0, 0, 1, 1], [], []>} : vector<16x32xf32>, vector<32x256xf32>, vector<16x256xf32> -> vector<16x256xf32>
    %c0_3 = arith.constant 0 : index
    %c0_4 = arith.constant 0 : index
    %3 = vector.load %arg3[%c0_3, %c0_4] : memref<1x256xf32, #tpu.memory_space<vmem>>, vector<1x256xf32>
    %4 = vector.broadcast %3 : vector<1x256xf32> to vector<16x256xf32>
    %5 = arith.addf %2, %4 : vector<16x256xf32>
    %c0_5 = arith.constant 0 : index
    %c0_6 = arith.constant 0 : index
    %6 = vector.load %arg4[%c0_5, %c0_6] : memref<64x256xf32, #tpu.memory_space<vmem>>, vector<64x256xf32>
    %7 = vector.extract_strided_slice %5 {offsets = [0, 0], sizes = [2, 256], strides = [1, 1]} : vector<16x256xf32> to vector<2x256xf32>
    %8 = arith.negf %7 : vector<2x256xf32>
    %9 = math.exp %8 : vector<2x256xf32>
    %cst_7 = arith.constant 1.000000e+00 : f32
    %10 = vector.broadcast %cst_7 : f32 to vector<2x256xf32>
    %11 = arith.addf %10, %9 : vector<2x256xf32>
    %12 = arith.divf %10, %11 : vector<2x256xf32>
    %13 = vector.extract_strided_slice %12 {offsets = [0, 0], sizes = [2, 64], strides = [1, 1]} : vector<2x256xf32> to vector<2x64xf32>
    %14 = vector.extract_strided_slice %12 {offsets = [0, 128], sizes = [2, 64], strides = [1, 1]} : vector<2x256xf32> to vector<2x64xf32>
    %cst_8 = arith.constant 2.000000e+00 : f32
    %15 = vector.broadcast %cst_8 : f32 to vector<2x64xf32>
    %16 = arith.mulf %15, %14 : vector<2x64xf32>
    %cst_9 = arith.constant 1.000000e+00 : f32
    %17 = vector.broadcast %cst_9 : f32 to vector<2x64xf32>
    %18 = arith.subf %16, %17 : vector<2x64xf32>
    %19 = vector.extract_strided_slice %12 {offsets = [0, 192], sizes = [2, 64], strides = [1, 1]} : vector<2x256xf32> to vector<2x64xf32>
    %20 = arith.mulf %13, %18 : vector<2x64xf32>
    %21 = math.tanh %20 : vector<2x64xf32>
    %22 = arith.mulf %19, %21 : vector<2x64xf32>
    %23 = vector.extract_strided_slice %22 {offsets = [0, 0], sizes = [2, 32], strides = [1, 1]} : vector<2x64xf32> to vector<2x32xf32>
    %24 = vector.extract_strided_slice %22 {offsets = [0, 32], sizes = [2, 32], strides = [1, 1]} : vector<2x64xf32> to vector<2x32xf32>
    %25 = vector.extract_strided_slice %5 {offsets = [2, 0], sizes = [2, 256], strides = [1, 1]} : vector<16x256xf32> to vector<2x256xf32>
    %cst_10 = arith.constant dense<0.000000e+00> : vector<2x256xf32>
    %26 = tpu.matmul %22, %6, %cst_10 {dimension_numbers = #tpu.dot_dimension_numbers<[1], [0], [0], [1], [0, 0, 1, 1], [], []>} : vector<2x64xf32>, vector<64x256xf32>, vector<2x256xf32> -> vector<2x256xf32>
    %27 = arith.addf %25, %26 : vector<2x256xf32>
    %28 = arith.negf %27 : vector<2x256xf32>
    %29 = math.exp %28 : vector<2x256xf32>
    %cst_11 = arith.constant 1.000000e+00 : f32
    %30 = vector.broadcast %cst_11 : f32 to vector<2x256xf32>
    %31 = arith.addf %30, %29 : vector<2x256xf32>
    %32 = arith.divf %30, %31 : vector<2x256xf32>
    %33 = vector.extract_strided_slice %32 {offsets = [0, 0], sizes = [2, 64], strides = [1, 1]} : vector<2x256xf32> to vector<2x64xf32>
    %34 = vector.extract_strided_slice %32 {offsets = [0, 64], sizes = [2, 64], strides = [1, 1]} : vector<2x256xf32> to vector<2x64xf32>
    %35 = vector.extract_strided_slice %32 {offsets = [0, 128], sizes = [2, 64], strides = [1, 1]} : vector<2x256xf32> to vector<2x64xf32>
    %cst_12 = arith.constant 2.000000e+00 : f32
    %36 = vector.broadcast %cst_12 : f32 to vector<2x64xf32>
    %37 = arith.mulf %36, %35 : vector<2x64xf32>
    %cst_13 = arith.constant 1.000000e+00 : f32
    %38 = vector.broadcast %cst_13 : f32 to vector<2x64xf32>
    %39 = arith.subf %37, %38 : vector<2x64xf32>
    %40 = vector.extract_strided_slice %32 {offsets = [0, 192], sizes = [2, 64], strides = [1, 1]} : vector<2x256xf32> to vector<2x64xf32>
    %41 = arith.mulf %34, %20 : vector<2x64xf32>
    %42 = arith.mulf %33, %39 : vector<2x64xf32>
    %43 = arith.addf %41, %42 : vector<2x64xf32>
    %44 = math.tanh %43 : vector<2x64xf32>
    %45 = arith.mulf %40, %44 : vector<2x64xf32>
    %46 = vector.extract_strided_slice %45 {offsets = [0, 0], sizes = [2, 32], strides = [1, 1]} : vector<2x64xf32> to vector<2x32xf32>
    %47 = vector.extract_strided_slice %45 {offsets = [0, 32], sizes = [2, 32], strides = [1, 1]} : vector<2x64xf32> to vector<2x32xf32>
    %48 = vector.extract_strided_slice %5 {offsets = [4, 0], sizes = [2, 256], strides = [1, 1]} : vector<16x256xf32> to vector<2x256xf32>
    %cst_14 = arith.constant dense<0.000000e+00> : vector<2x256xf32>
    %49 = tpu.matmul %45, %6, %cst_14 {dimension_numbers = #tpu.dot_dimension_numbers<[1], [0], [0], [1], [0, 0, 1, 1], [], []>} : vector<2x64xf32>, vector<64x256xf32>, vector<2x256xf32> -> vector<2x256xf32>
    %50 = arith.addf %48, %49 : vector<2x256xf32>
    %51 = arith.negf %50 : vector<2x256xf32>
    %52 = math.exp %51 : vector<2x256xf32>
    %cst_15 = arith.constant 1.000000e+00 : f32
    %53 = vector.broadcast %cst_15 : f32 to vector<2x256xf32>
    %54 = arith.addf %53, %52 : vector<2x256xf32>
    %55 = arith.divf %53, %54 : vector<2x256xf32>
    %56 = vector.extract_strided_slice %55 {offsets = [0, 0], sizes = [2, 64], strides = [1, 1]} : vector<2x256xf32> to vector<2x64xf32>
    %57 = vector.extract_strided_slice %55 {offsets = [0, 64], sizes = [2, 64], strides = [1, 1]} : vector<2x256xf32> to vector<2x64xf32>
    %58 = vector.extract_strided_slice %55 {offsets = [0, 128], sizes = [2, 64], strides = [1, 1]} : vector<2x256xf32> to vector<2x64xf32>
    %cst_16 = arith.constant 2.000000e+00 : f32
    %59 = vector.broadcast %cst_16 : f32 to vector<2x64xf32>
    %60 = arith.mulf %59, %58 : vector<2x64xf32>
    %cst_17 = arith.constant 1.000000e+00 : f32
    %61 = vector.broadcast %cst_17 : f32 to vector<2x64xf32>
    %62 = arith.subf %60, %61 : vector<2x64xf32>
    %63 = vector.extract_strided_slice %55 {offsets = [0, 192], sizes = [2, 64], strides = [1, 1]} : vector<2x256xf32> to vector<2x64xf32>
    %64 = arith.mulf %57, %43 : vector<2x64xf32>
    %65 = arith.mulf %56, %62 : vector<2x64xf32>
    %66 = arith.addf %64, %65 : vector<2x64xf32>
    %67 = math.tanh %66 : vector<2x64xf32>
    %68 = arith.mulf %63, %67 : vector<2x64xf32>
    %69 = vector.extract_strided_slice %68 {offsets = [0, 0], sizes = [2, 32], strides = [1, 1]} : vector<2x64xf32> to vector<2x32xf32>
    %70 = vector.extract_strided_slice %68 {offsets = [0, 32], sizes = [2, 32], strides = [1, 1]} : vector<2x64xf32> to vector<2x32xf32>
    %71 = vector.extract_strided_slice %5 {offsets = [6, 0], sizes = [2, 256], strides = [1, 1]} : vector<16x256xf32> to vector<2x256xf32>
    %cst_18 = arith.constant dense<0.000000e+00> : vector<2x256xf32>
    %72 = tpu.matmul %68, %6, %cst_18 {dimension_numbers = #tpu.dot_dimension_numbers<[1], [0], [0], [1], [0, 0, 1, 1], [], []>} : vector<2x64xf32>, vector<64x256xf32>, vector<2x256xf32> -> vector<2x256xf32>
    %73 = arith.addf %71, %72 : vector<2x256xf32>
    %74 = arith.negf %73 : vector<2x256xf32>
    %75 = math.exp %74 : vector<2x256xf32>
    %cst_19 = arith.constant 1.000000e+00 : f32
    %76 = vector.broadcast %cst_19 : f32 to vector<2x256xf32>
    %77 = arith.addf %76, %75 : vector<2x256xf32>
    %78 = arith.divf %76, %77 : vector<2x256xf32>
    %79 = vector.extract_strided_slice %78 {offsets = [0, 0], sizes = [2, 64], strides = [1, 1]} : vector<2x256xf32> to vector<2x64xf32>
    %80 = vector.extract_strided_slice %78 {offsets = [0, 64], sizes = [2, 64], strides = [1, 1]} : vector<2x256xf32> to vector<2x64xf32>
    %81 = vector.extract_strided_slice %78 {offsets = [0, 128], sizes = [2, 64], strides = [1, 1]} : vector<2x256xf32> to vector<2x64xf32>
    %cst_20 = arith.constant 2.000000e+00 : f32
    %82 = vector.broadcast %cst_20 : f32 to vector<2x64xf32>
    %83 = arith.mulf %82, %81 : vector<2x64xf32>
    %cst_21 = arith.constant 1.000000e+00 : f32
    %84 = vector.broadcast %cst_21 : f32 to vector<2x64xf32>
    %85 = arith.subf %83, %84 : vector<2x64xf32>
    %86 = vector.extract_strided_slice %78 {offsets = [0, 192], sizes = [2, 64], strides = [1, 1]} : vector<2x256xf32> to vector<2x64xf32>
    %87 = arith.mulf %80, %66 : vector<2x64xf32>
    %88 = arith.mulf %79, %85 : vector<2x64xf32>
    %89 = arith.addf %87, %88 : vector<2x64xf32>
    %90 = math.tanh %89 : vector<2x64xf32>
    %91 = arith.mulf %86, %90 : vector<2x64xf32>
    %92 = vector.extract_strided_slice %91 {offsets = [0, 0], sizes = [2, 32], strides = [1, 1]} : vector<2x64xf32> to vector<2x32xf32>
    %93 = vector.extract_strided_slice %91 {offsets = [0, 32], sizes = [2, 32], strides = [1, 1]} : vector<2x64xf32> to vector<2x32xf32>
    %94 = vector.extract_strided_slice %5 {offsets = [8, 0], sizes = [2, 256], strides = [1, 1]} : vector<16x256xf32> to vector<2x256xf32>
    %cst_22 = arith.constant dense<0.000000e+00> : vector<2x256xf32>
    %95 = tpu.matmul %91, %6, %cst_22 {dimension_numbers = #tpu.dot_dimension_numbers<[1], [0], [0], [1], [0, 0, 1, 1], [], []>} : vector<2x64xf32>, vector<64x256xf32>, vector<2x256xf32> -> vector<2x256xf32>
    %96 = arith.addf %94, %95 : vector<2x256xf32>
    %97 = arith.negf %96 : vector<2x256xf32>
    %98 = math.exp %97 : vector<2x256xf32>
    %cst_23 = arith.constant 1.000000e+00 : f32
    %99 = vector.broadcast %cst_23 : f32 to vector<2x256xf32>
    %100 = arith.addf %99, %98 : vector<2x256xf32>
    %101 = arith.divf %99, %100 : vector<2x256xf32>
    %102 = vector.extract_strided_slice %101 {offsets = [0, 0], sizes = [2, 64], strides = [1, 1]} : vector<2x256xf32> to vector<2x64xf32>
    %103 = vector.extract_strided_slice %101 {offsets = [0, 64], sizes = [2, 64], strides = [1, 1]} : vector<2x256xf32> to vector<2x64xf32>
    %104 = vector.extract_strided_slice %101 {offsets = [0, 128], sizes = [2, 64], strides = [1, 1]} : vector<2x256xf32> to vector<2x64xf32>
    %cst_24 = arith.constant 2.000000e+00 : f32
    %105 = vector.broadcast %cst_24 : f32 to vector<2x64xf32>
    %106 = arith.mulf %105, %104 : vector<2x64xf32>
    %cst_25 = arith.constant 1.000000e+00 : f32
    %107 = vector.broadcast %cst_25 : f32 to vector<2x64xf32>
    %108 = arith.subf %106, %107 : vector<2x64xf32>
    %109 = vector.extract_strided_slice %101 {offsets = [0, 192], sizes = [2, 64], strides = [1, 1]} : vector<2x256xf32> to vector<2x64xf32>
    %110 = arith.mulf %103, %89 : vector<2x64xf32>
    %111 = arith.mulf %102, %108 : vector<2x64xf32>
    %112 = arith.addf %110, %111 : vector<2x64xf32>
    %113 = math.tanh %112 : vector<2x64xf32>
    %114 = arith.mulf %109, %113 : vector<2x64xf32>
    %115 = vector.extract_strided_slice %114 {offsets = [0, 0], sizes = [2, 32], strides = [1, 1]} : vector<2x64xf32> to vector<2x32xf32>
    %116 = vector.extract_strided_slice %114 {offsets = [0, 32], sizes = [2, 32], strides = [1, 1]} : vector<2x64xf32> to vector<2x32xf32>
    %117 = vector.extract_strided_slice %5 {offsets = [10, 0], sizes = [2, 256], strides = [1, 1]} : vector<16x256xf32> to vector<2x256xf32>
    %cst_26 = arith.constant dense<0.000000e+00> : vector<2x256xf32>
    %118 = tpu.matmul %114, %6, %cst_26 {dimension_numbers = #tpu.dot_dimension_numbers<[1], [0], [0], [1], [0, 0, 1, 1], [], []>} : vector<2x64xf32>, vector<64x256xf32>, vector<2x256xf32> -> vector<2x256xf32>
    %119 = arith.addf %117, %118 : vector<2x256xf32>
    %120 = arith.negf %119 : vector<2x256xf32>
    %121 = math.exp %120 : vector<2x256xf32>
    %cst_27 = arith.constant 1.000000e+00 : f32
    %122 = vector.broadcast %cst_27 : f32 to vector<2x256xf32>
    %123 = arith.addf %122, %121 : vector<2x256xf32>
    %124 = arith.divf %122, %123 : vector<2x256xf32>
    %125 = vector.extract_strided_slice %124 {offsets = [0, 0], sizes = [2, 64], strides = [1, 1]} : vector<2x256xf32> to vector<2x64xf32>
    %126 = vector.extract_strided_slice %124 {offsets = [0, 64], sizes = [2, 64], strides = [1, 1]} : vector<2x256xf32> to vector<2x64xf32>
    %127 = vector.extract_strided_slice %124 {offsets = [0, 128], sizes = [2, 64], strides = [1, 1]} : vector<2x256xf32> to vector<2x64xf32>
    %cst_28 = arith.constant 2.000000e+00 : f32
    %128 = vector.broadcast %cst_28 : f32 to vector<2x64xf32>
    %129 = arith.mulf %128, %127 : vector<2x64xf32>
    %cst_29 = arith.constant 1.000000e+00 : f32
    %130 = vector.broadcast %cst_29 : f32 to vector<2x64xf32>
    %131 = arith.subf %129, %130 : vector<2x64xf32>
    %132 = vector.extract_strided_slice %124 {offsets = [0, 192], sizes = [2, 64], strides = [1, 1]} : vector<2x256xf32> to vector<2x64xf32>
    %133 = arith.mulf %126, %112 : vector<2x64xf32>
    %134 = arith.mulf %125, %131 : vector<2x64xf32>
    %135 = arith.addf %133, %134 : vector<2x64xf32>
    %136 = math.tanh %135 : vector<2x64xf32>
    %137 = arith.mulf %132, %136 : vector<2x64xf32>
    %138 = vector.extract_strided_slice %137 {offsets = [0, 0], sizes = [2, 32], strides = [1, 1]} : vector<2x64xf32> to vector<2x32xf32>
    %139 = vector.extract_strided_slice %137 {offsets = [0, 32], sizes = [2, 32], strides = [1, 1]} : vector<2x64xf32> to vector<2x32xf32>
    %140 = vector.extract_strided_slice %5 {offsets = [12, 0], sizes = [2, 256], strides = [1, 1]} : vector<16x256xf32> to vector<2x256xf32>
    %cst_30 = arith.constant dense<0.000000e+00> : vector<2x256xf32>
    %141 = tpu.matmul %137, %6, %cst_30 {dimension_numbers = #tpu.dot_dimension_numbers<[1], [0], [0], [1], [0, 0, 1, 1], [], []>} : vector<2x64xf32>, vector<64x256xf32>, vector<2x256xf32> -> vector<2x256xf32>
    %142 = arith.addf %140, %141 : vector<2x256xf32>
    %143 = arith.negf %142 : vector<2x256xf32>
    %144 = math.exp %143 : vector<2x256xf32>
    %cst_31 = arith.constant 1.000000e+00 : f32
    %145 = vector.broadcast %cst_31 : f32 to vector<2x256xf32>
    %146 = arith.addf %145, %144 : vector<2x256xf32>
    %147 = arith.divf %145, %146 : vector<2x256xf32>
    %148 = vector.extract_strided_slice %147 {offsets = [0, 0], sizes = [2, 64], strides = [1, 1]} : vector<2x256xf32> to vector<2x64xf32>
    %149 = vector.extract_strided_slice %147 {offsets = [0, 64], sizes = [2, 64], strides = [1, 1]} : vector<2x256xf32> to vector<2x64xf32>
    %150 = vector.extract_strided_slice %147 {offsets = [0, 128], sizes = [2, 64], strides = [1, 1]} : vector<2x256xf32> to vector<2x64xf32>
    %cst_32 = arith.constant 2.000000e+00 : f32
    %151 = vector.broadcast %cst_32 : f32 to vector<2x64xf32>
    %152 = arith.mulf %151, %150 : vector<2x64xf32>
    %cst_33 = arith.constant 1.000000e+00 : f32
    %153 = vector.broadcast %cst_33 : f32 to vector<2x64xf32>
    %154 = arith.subf %152, %153 : vector<2x64xf32>
    %155 = vector.extract_strided_slice %147 {offsets = [0, 192], sizes = [2, 64], strides = [1, 1]} : vector<2x256xf32> to vector<2x64xf32>
    %156 = arith.mulf %149, %135 : vector<2x64xf32>
    %157 = arith.mulf %148, %154 : vector<2x64xf32>
    %158 = arith.addf %156, %157 : vector<2x64xf32>
    %159 = math.tanh %158 : vector<2x64xf32>
    %160 = arith.mulf %155, %159 : vector<2x64xf32>
    %161 = vector.extract_strided_slice %160 {offsets = [0, 0], sizes = [2, 32], strides = [1, 1]} : vector<2x64xf32> to vector<2x32xf32>
    %162 = vector.extract_strided_slice %160 {offsets = [0, 32], sizes = [2, 32], strides = [1, 1]} : vector<2x64xf32> to vector<2x32xf32>
    %163 = vector.extract_strided_slice %5 {offsets = [14, 0], sizes = [2, 256], strides = [1, 1]} : vector<16x256xf32> to vector<2x256xf32>
    %cst_34 = arith.constant dense<0.000000e+00> : vector<2x256xf32>
    %164 = tpu.matmul %160, %6, %cst_34 {dimension_numbers = #tpu.dot_dimension_numbers<[1], [0], [0], [1], [0, 0, 1, 1], [], []>} : vector<2x64xf32>, vector<64x256xf32>, vector<2x256xf32> -> vector<2x256xf32>
    %165 = arith.addf %163, %164 : vector<2x256xf32>
    %166 = arith.negf %165 : vector<2x256xf32>
    %167 = math.exp %166 : vector<2x256xf32>
    %cst_35 = arith.constant 1.000000e+00 : f32
    %168 = vector.broadcast %cst_35 : f32 to vector<2x256xf32>
    %169 = arith.addf %168, %167 : vector<2x256xf32>
    %170 = arith.divf %168, %169 : vector<2x256xf32>
    %171 = vector.extract_strided_slice %170 {offsets = [0, 0], sizes = [2, 64], strides = [1, 1]} : vector<2x256xf32> to vector<2x64xf32>
    %172 = vector.extract_strided_slice %170 {offsets = [0, 64], sizes = [2, 64], strides = [1, 1]} : vector<2x256xf32> to vector<2x64xf32>
    %173 = vector.extract_strided_slice %170 {offsets = [0, 128], sizes = [2, 64], strides = [1, 1]} : vector<2x256xf32> to vector<2x64xf32>
    %cst_36 = arith.constant 2.000000e+00 : f32
    %174 = vector.broadcast %cst_36 : f32 to vector<2x64xf32>
    %175 = arith.mulf %174, %173 : vector<2x64xf32>
    %cst_37 = arith.constant 1.000000e+00 : f32
    %176 = vector.broadcast %cst_37 : f32 to vector<2x64xf32>
    %177 = arith.subf %175, %176 : vector<2x64xf32>
    %178 = vector.extract_strided_slice %170 {offsets = [0, 192], sizes = [2, 64], strides = [1, 1]} : vector<2x256xf32> to vector<2x64xf32>
    %179 = arith.mulf %172, %158 : vector<2x64xf32>
    %180 = arith.mulf %171, %177 : vector<2x64xf32>
    %181 = arith.addf %179, %180 : vector<2x64xf32>
    %182 = math.tanh %181 : vector<2x64xf32>
    %183 = arith.mulf %178, %182 : vector<2x64xf32>
    %184 = vector.extract_strided_slice %183 {offsets = [0, 0], sizes = [2, 32], strides = [1, 1]} : vector<2x64xf32> to vector<2x32xf32>
    %185 = vector.extract_strided_slice %183 {offsets = [0, 32], sizes = [2, 32], strides = [1, 1]} : vector<2x64xf32> to vector<2x32xf32>
    %186 = tpu.concatenate %23, %185 in 1 : vector<2x32xf32>, vector<2x32xf32> -> vector<2x64xf32>
    %187 = tpu.concatenate %46, %162 in 1 : vector<2x32xf32>, vector<2x32xf32> -> vector<2x64xf32>
    %188 = tpu.concatenate %69, %139 in 1 : vector<2x32xf32>, vector<2x32xf32> -> vector<2x64xf32>
    %189 = tpu.concatenate %92, %116 in 1 : vector<2x32xf32>, vector<2x32xf32> -> vector<2x64xf32>
    %190 = tpu.concatenate %115, %93 in 1 : vector<2x32xf32>, vector<2x32xf32> -> vector<2x64xf32>
    %191 = tpu.concatenate %138, %70 in 1 : vector<2x32xf32>, vector<2x32xf32> -> vector<2x64xf32>
    %192 = tpu.concatenate %161, %47 in 1 : vector<2x32xf32>, vector<2x32xf32> -> vector<2x64xf32>
    %193 = tpu.concatenate %184, %24 in 1 : vector<2x32xf32>, vector<2x32xf32> -> vector<2x64xf32>
    %194 = tpu.concatenate %186, %187, %188, %189, %190, %191, %192, %193 in 0 : vector<2x64xf32>, vector<2x64xf32>, vector<2x64xf32>, vector<2x64xf32>, vector<2x64xf32>, vector<2x64xf32>, vector<2x64xf32>, vector<2x64xf32> -> vector<16x64xf32>
    %c0_38 = arith.constant 0 : index
    %c0_39 = arith.constant 0 : index
    %195 = vector.load %arg5[%c0_38, %c0_39] : memref<64x8xf32, #tpu.memory_space<vmem>>, vector<64x8xf32>
    %cst_40 = arith.constant dense<0.000000e+00> : vector<16x8xf32>
    %196 = tpu.matmul %194, %195, %cst_40 {dimension_numbers = #tpu.dot_dimension_numbers<[1], [0], [0], [1], [0, 0, 1, 1], [], []>} : vector<16x64xf32>, vector<64x8xf32>, vector<16x8xf32> -> vector<16x8xf32>
    %c0_41 = arith.constant 0 : index
    %c0_42 = arith.constant 0 : index
    %197 = vector.load %arg6[%c0_41, %c0_42] : memref<1x8xf32, #tpu.memory_space<vmem>>, vector<1x8xf32>
    %198 = vector.broadcast %197 : vector<1x8xf32> to vector<16x8xf32>
    %199 = arith.addf %196, %198 : vector<16x8xf32>
    %c0_43 = arith.constant 0 : index
    %c0_44 = arith.constant 0 : index
    %200 = vector.load %arg7[%c0_43, %c0_44] : memref<16x8xf32, #tpu.memory_space<vmem>>, vector<16x8xf32>
    tpu.vector_store %arg7[%c0_43, %c0_44], %199 {strides = array<i32>} : memref<16x8xf32, #tpu.memory_space<vmem>>, vector<16x8xf32>,
    return
  }
  func.func @transform_0(%arg0: i32) -> (i32, i32) {
    %c0_i32 = arith.constant 0 : i32
    %c0_i32_0 = arith.constant 0 : i32
    %c0_i32_1 = arith.constant 0 : i32
    return %c0_i32, %c0_i32_0 : i32, i32
  }
  func.func @transform_1(%arg0: i32) -> (i32, i32) {
    %c0_i32 = arith.constant 0 : i32
    %c0_i32_0 = arith.constant 0 : i32
    %c0_i32_1 = arith.constant 0 : i32
    return %c0_i32, %c0_i32_0 : i32, i32
  }
  func.func @transform_2(%arg0: i32) -> (i32, i32) {
    %c0_i32 = arith.constant 0 : i32
    %c0_i32_0 = arith.constant 0 : i32
    %c0_i32_1 = arith.constant 0 : i32
    return %c0_i32, %c0_i32_0 : i32, i32
  }
  func.func @transform_3(%arg0: i32) -> (i32, i32) {
    %c0_i32 = arith.constant 0 : i32
    %c0_i32_0 = arith.constant 0 : i32
    %c0_i32_1 = arith.constant 0 : i32
    return %c0_i32, %c0_i32_0 : i32, i32
  }
  func.func @transform_4(%arg0: i32) -> (i32, i32) {
    %c0_i32 = arith.constant 0 : i32
    %c0_i32_0 = arith.constant 0 : i32
    %c0_i32_1 = arith.constant 0 : i32
    return %c0_i32, %c0_i32_0 : i32, i32
  }
  func.func @transform_5(%arg0: i32) -> (i32, i32) {
    %c0_i32 = arith.constant 0 : i32
    %c0_i32_0 = arith.constant 0 : i32
    %c0_i32_1 = arith.constant 0 : i32
    return %c0_i32, %c0_i32_0 : i32, i32
  }
  func.func @transform_6(%arg0: i32) -> (i32, i32) {
    %c0_i32 = arith.constant 0 : i32
    %c0_i32_0 = arith.constant 0 : i32
    %c0_i32_1 = arith.constant 0 : i32
    return %c0_i32, %c0_i32_0 : i32, i32
  }
}

</mosaic_0001>

<llo_original>
// kernel: bilstm_forward.1
$region0: #{bilstm_forward.1}
  #allocation0 [shape = 'u32[]', space=smem, size = 0x4, offset = 0x4, fixed_abs, tag = 'smem constant byte address 0x4 - core index']
  #allocation1 [shape = 'u32[144,128]{1,0:T(1,128)}', space=vmem, size = 0x12000, scoped, tag = 'internal scratch']
  %s0 = inlined_call_operand.vmem [shape: f32[16,32], index: 0, kind: input, shape index: {}]
  %s1 = inlined_call_operand.vmem [shape: f32[32,256], index: 1, kind: input, shape index: {}]
  %s2 = inlined_call_operand.vmem [shape: f32[1,256], index: 2, kind: input, shape index: {}]
  %s3 = inlined_call_operand.vmem [shape: f32[64,256], index: 3, kind: input, shape index: {}]
  %s4 = inlined_call_operand.vmem [shape: f32[64,8], index: 4, kind: input, shape index: {}]
  %s5 = inlined_call_operand.vmem [shape: f32[1,8], index: 5, kind: input, shape index: {}]
  %s6 = inlined_call_operand.hbm [shape: f32[16,8], index: 6, kind: output, shape index: {}]
  %s7 = sld [smem:[#allocation0]]
  $region34: #{bilstm_forward.1} parent=0
    _
  %s9 = ssub.s32 1, %s7
  %s10 = scalar_select 0, %s9, %s7
  $region1: #{bilstm_forward.1} parent=0
    #allocation2 [shape = 'u8[8192]{0}', space=vmem, size = 0x2000, scoped, tag = 'output window, operand 0, single buffered']
    #allocation3 [shape = 's32[1]{0}', space=sflag, size = 0x4, scoped, tag = 'scoped memory for bilstm_forward.1']
    %11 = vsyncpa [#allocation3], 0
    // Predicated region
    $region2: #{bilstm_forward.1} parent=1 // pred_check
      _
    $region3: #{bilstm_forward.1} parent=1 // pred_check_branch
      %13 = sbr.rel (0) target = $region5
    $region4: #{bilstm_forward.1} parent=1 // pred_region
      _
    $region5: #{bilstm_forward.1} parent=1 // pred_fallthru
      _
    // Predicated region
    $region6: #{bilstm_forward.1} parent=1 // pred_check
      _
    $region7: #{bilstm_forward.1} parent=1 // pred_check_branch
      %15 = sbr.rel (0) target = $region9
    $region8: #{bilstm_forward.1} parent=1 // pred_region
      _
    $region9: #{bilstm_forward.1} parent=1 // pred_fallthru
      _
    // Predicated region
    $region10: #{bilstm_forward.1} parent=1 // pred_check
      _
    $region11: #{bilstm_forward.1} parent=1 // pred_check_branch
      %17 = sbr.rel (0) target = $region13
    $region12: #{bilstm_forward.1} parent=1 // pred_region
      _
    $region13: #{bilstm_forward.1} parent=1 // pred_fallthru
      _
    // Predicated region
    $region14: #{bilstm_forward.1} parent=1 // pred_check
      _
    $region15: #{bilstm_forward.1} parent=1 // pred_check_branch
      %19 = sbr.rel (0) target = $region17
    $region16: #{bilstm_forward.1} parent=1 // pred_region
      _
    $region17: #{bilstm_forward.1} parent=1 // pred_fallthru
      _
    // Predicated region
    $region18: #{bilstm_forward.1} parent=1 // pred_check
      _
    $region19: #{bilstm_forward.1} parent=1 // pred_check_branch
      %21 = sbr.rel (0) target = $region21
    $region20: #{bilstm_forward.1} parent=1 // pred_region
      _
    $region21: #{bilstm_forward.1} parent=1 // pred_fallthru
      _
    // Predicated region
    $region22: #{bilstm_forward.1} parent=1 // pred_check
      _
    $region23: #{bilstm_forward.1} parent=1 // pred_check_branch
      %23 = sbr.rel (0) target = $region25
    $region24: #{bilstm_forward.1} parent=1 // pred_region
      _
    $region25: #{bilstm_forward.1} parent=1 // pred_fallthru
      _
    %v24 = vld [vmem:[%s0] sm:$0xff]
    %v25 = vld [vmem:[%s0 + $0x8] sm:$0xff]
    %v26 = vld [vmem:[%s1] sm:$0xff]
    %v27 = vld [vmem:[%s1 + $0x8] sm:$0xff]
    %v28 = vld [vmem:[%s1 + $0x10] sm:$0xff]
    %v29 = vld [vmem:[%s1 + $0x18] sm:$0xff]
    %v30 = vld [vmem:[%s1 + $0x20] sm:$0xff]
    %v31 = vld [vmem:[%s1 + $0x28] sm:$0xff]
    %v32 = vld [vmem:[%s1 + $0x30] sm:$0xff]
    %v33 = vld [vmem:[%s1 + $0x38] sm:$0xff]
    %v34 = vld [vmem:[%s2] sm:$0x3]
    %v36 = vlaneseq
    %v37 = vshrl.u32 %v36, 7
    %v38 = vsub.s32 0, %v37
    %v39 = vrot.slane %v34, %v38
    %v40 = vlaneseq
    %v41 = vshrl.u32 %v40, 7
    %v42 = vsub.s32 1, %v41
    %v43 = vrot.slane %v34, %v42
    %vm46 = vcmask 261120
    %v48 = vsel %vm46, %v24, 0
    %v51 = vsel %vm46, %v25, 0
    %53 = vmatprep.subr.mxu0 %v27
    %54 = vmatpush1.msra.mxu0 %v26
    %55 = vmatprep.subr.mxu0 %v29
    %56 = vmatpush1.msra.mxu0 %v28
    %57 = vmatprep.subr.mxu0 %v31
    %58 = vmatpush1.msra.mxu0 %v30
    %59 = vmatprep.subr.mxu0 %v33
    %60 = vmatpush1.msra.mxu0 %v32
    %61 = vmatprep.subr.mxu0 0.0
    %62 = vmatpush1.msra.mxu0 0.0
    %63 = vmatprep.subr.mxu0 0.0
    %64 = vmatpush1.msra.mxu0 0.0
    %65 = vmatprep.subr.mxu0 0.0
    %66 = vmatpush1.msra.mxu0 0.0
    %67 = vmatprep.subr.mxu0 0.0
    %68 = vmatpush1.msra.mxu0 0.0
    %69 = vmatprep.subr.mxu0 0.0
    %70 = vmatpush1.msra.mxu0 0.0
    %71 = vmatprep.subr.mxu0 0.0
    %72 = vmatpush1.msra.mxu0 0.0
    %73 = vmatprep.subr.mxu0 0.0
    %74 = vmatpush1.msra.mxu0 0.0
    %75 = vmatprep.subr.mxu0 0.0
    %76 = vmatpush1.msra.mxu0 0.0
    %77 = vmatprep.subr.mxu0 0.0
    %78 = vmatpush1.msra.mxu0 0.0
    %79 = vmatprep.subr.mxu0 0.0
    %80 = vmatpush1.msra.mxu0 0.0
    %81 = vmatprep.subr.mxu0 0.0
    %82 = vmatpush1.msra.mxu0 0.0
    %83 = vmatprep.subr.mxu0 0.0
    %84 = vmatpush1.msra.mxu0 0.0
    %85 = vmatprep.subr.mxu0 0.0
    %86 = vmatpush1.msra.mxu0 0.0
    %87 = vmatprep.subr.mxu0 0.0
    %88 = vmatpush1.msra.mxu0 0.0
    %89 = vmatprep.subr.mxu0 0.0
    %90 = vmatpush1.msra.mxu0 0.0
    %91 = vmatprep.subr.mxu0 0.0
    %92 = vmatpush1.msra.mxu0 0.0
    %93 = vmatprep.subr.mxu0 0.0
    %94 = vmatpush1.msra.mxu0 0.0
    %95 = vmatprep.subr.mxu0 0.0
    %96 = vmatpush1.msra.mxu0 0.0
    %97 = vmatprep.subr.mxu0 0.0
    %98 = vmatpush1.msra.mxu0 0.0
    %99 = vmatprep.subr.mxu0 0.0
    %100 = vmatpush1.msra.mxu0 0.0
    %101 = vmatprep.subr.mxu0 0.0
    %102 = vmatpush1.msra.mxu0 0.0
    %103 = vmatprep.subr.mxu0 0.0
    %104 = vmatpush1.msra.mxu0 0.0
    %105 = vmatprep.subr.mxu0 0.0
    %106 = vmatpush1.msra.mxu0 0.0
    %107 = vmatprep.subr.mxu0 0.0
    %108 = vmatpush1.msra.mxu0 0.0
    %109 = vmatprep.subr.mxu0 0.0
    %110 = vmatpush1.msra.mxu0 0.0
    %111 = vmatprep.subr.mxu0 0.0
    %112 = vmatpush1.msra.mxu0 0.0
    %113 = vmatprep.subr.mxu0 0.0
    %114 = vmatpush1.msra.mxu0 0.0
    %115 = vmatprep.subr.mxu0 0.0
    %116 = vmatpush1.msra.mxu0 0.0
    %117 = vmatprep.mubr.f32.mxu0 0.0
    %118 = vmatmul.mubr.f32.gmra.mrb[0].mxu0 %v48
    %v119 = vpop.f32.mrb[0].mxu0
    %v120 = vadd.f32 %v39, %v119
    %v121 = vpop.f32.mrb[0].mxu0
    %v122 = vadd.f32 %v43, %v121
    %123 = vmatprep.mubr.f32.mxu0 0.0
    %124 = vmatmul.mubr.f32.gmra.mrb[0].mxu0 %v51
    %v125 = vpop.f32.mrb[0].mxu0
    %v126 = vadd.f32 %v39, %v125
    %v127 = vpop.f32.mrb[0].mxu0
    %v128 = vadd.f32 %v43, %v127
    %129 = vdwg.mxu0
    %v130 = vld [vmem:[%s3] sm:$0xff]
    %v131 = vld [vmem:[%s3 + $0x8] sm:$0xff]
    %v132 = vld [vmem:[%s3 + $0x10] sm:$0xff]
    %v133 = vld [vmem:[%s3 + $0x18] sm:$0xff]
    %v134 = vld [vmem:[%s3 + $0x20] sm:$0xff]
    %v135 = vld [vmem:[%s3 + $0x28] sm:$0xff]
    %v136 = vld [vmem:[%s3 + $0x30] sm:$0xff]
    %v137 = vld [vmem:[%s3 + $0x38] sm:$0xff]
    %v138 = vld [vmem:[%s3 + $0x40] sm:$0xff]
    %v139 = vld [vmem:[%s3 + $0x48] sm:$0xff]
    %v140 = vld [vmem:[%s3 + $0x50] sm:$0xff]
    %v141 = vld [vmem:[%s3 + $0x58] sm:$0xff]
    %v142 = vld [vmem:[%s3 + $0x60] sm:$0xff]
    %v143 = vld [vmem:[%s3 + $0x68] sm:$0xff]
    %v144 = vld [vmem:[%s3 + $0x70] sm:$0xff]
    %v145 = vld [vmem:[%s3 + $0x78] sm:$0xff]
    %v146 = vxor.u32 %v120, 2147483648
    %v147 = vxor.u32 %v122, 2147483648
    %v148 = vmul.f32 %v146, 1.442695
    %v149 = vpow.pop %v148
    %v150 = vmul.f32 %v147, 1.442695
    %v151 = vpow.pop %v150
    %v152 = vadd.f32 %v149, 1.0
    %v153 = vadd.f32 %v151, 1.0
    %v154 = vrcp.pop %v152
    %v155 = vmul.f32 1.0, %v154
    %v156 = vrcp.pop %v153
    %v157 = vmul.f32 1.0, %v156
    %v158 = vmul.f32 %v157, 2.0
    %v159 = vsub.f32 %v158, 1.0
    %v160 = vmul.f32 %v155, %v159
    %v161 = vtanh.pop %v160
    %163 = vrot.lane.b32.xlu0 %v161, 64
    %v164 = vpop.permute.xlu0 %163
    %v166 = vmul.f32 %v157, %v164
    %168 = vrot.lane.b32.xlu0 %v166, 64
    %v169 = vpop.permute.xlu0 %168
    %vm170 = vcmask 523264
    %v171 = vsel %vm170, %v169, 0
    %173 = vmatprep.subr.mxu0 %v131
    %174 = vmatpush1.msra.mxu0 %v130
    %175 = vmatprep.subr.mxu0 %v133
    %176 = vmatpush1.msra.mxu0 %v132
    %177 = vmatprep.subr.mxu0 %v135
    %178 = vmatpush1.msra.mxu0 %v134
    %179 = vmatprep.subr.mxu0 %v137
    %180 = vmatpush1.msra.mxu0 %v136
    %181 = vmatprep.subr.mxu0 %v139
    %182 = vmatpush1.msra.mxu0 %v138
    %183 = vmatprep.subr.mxu0 %v141
    %184 = vmatpush1.msra.mxu0 %v140
    %185 = vmatprep.subr.mxu0 %v143
    %186 = vmatpush1.msra.mxu0 %v142
    %187 = vmatprep.subr.mxu0 %v145
    %188 = vmatpush1.msra.mxu0 %v144
    %189 = vmatprep.subr.mxu0 0.0
    %190 = vmatpush1.msra.mxu0 0.0
    %191 = vmatprep.subr.mxu0 0.0
    %192 = vmatpush1.msra.mxu0 0.0
    %193 = vmatprep.subr.mxu0 0.0
    %194 = vmatpush1.msra.mxu0 0.0
    %195 = vmatprep.subr.mxu0 0.0
    %196 = vmatpush1.msra.mxu0 0.0
    %197 = vmatprep.subr.mxu0 0.0
    %198 = vmatpush1.msra.mxu0 0.0
    %199 = vmatprep.subr.mxu0 0.0
    %200 = vmatpush1.msra.mxu0 0.0
    %201 = vmatprep.subr.mxu0 0.0
    %202 = vmatpush1.msra.mxu0 0.0
    %203 = vmatprep.subr.mxu0 0.0
    %204 = vmatpush1.msra.mxu0 0.0
    %205 = vmatprep.subr.mxu0 0.0
    %206 = vmatpush1.msra.mxu0 0.0
    %207 = vmatprep.subr.mxu0 0.0
    %208 = vmatpush1.msra.mxu0 0.0
    %209 = vmatprep.subr.mxu0 0.0
    %210 = vmatpush1.msra.mxu0 0.0
    %211 = vmatprep.subr.mxu0 0.0
    %212 = vmatpush1.msra.mxu0 0.0
    %213 = vmatprep.subr.mxu0 0.0
    %214 = vmatpush1.msra.mxu0 0.0
    %215 = vmatprep.subr.mxu0 0.0
    %216 = vmatpush1.msra.mxu0 0.0
    %217 = vmatprep.subr.mxu0 0.0
    %218 = vmatpush1.msra.mxu0 0.0
    %219 = vmatprep.subr.mxu0 0.0
    %220 = vmatpush1.msra.mxu0 0.0
    %221 = vmatprep.subr.mxu0 0.0
    %222 = vmatpush1.msra.mxu0 0.0
    %223 = vmatprep.subr.mxu0 0.0
    %224 = vmatpush1.msra.mxu0 0.0
    %225 = vmatprep.subr.mxu0 0.0
    %226 = vmatpush1.msra.mxu0 0.0
    %227 = vmatprep.subr.mxu0 0.0
    %228 = vmatpush1.msra.mxu0 0.0
    %229 = vmatprep.subr.mxu0 0.0
    %230 = vmatpush1.msra.mxu0 0.0
    %231 = vmatprep.subr.mxu0 0.0
    %232 = vmatpush1.msra.mxu0 0.0
    %233 = vmatprep.subr.mxu0 0.0
    %234 = vmatpush1.msra.mxu0 0.0
    %235 = vmatprep.subr.mxu0 0.0
    %236 = vmatpush1.msra.mxu0 0.0
    %237 = vmatprep.mubr.f32.mxu0 0.0
    %238 = vmatmul.mubr.f32.gmra.mrb[0].mxu0 %v171
    %v239 = vpop.f32.mrb[0].mxu0
    %v240 = vadd.f32 0.0, %v239
    %v241 = vpop.f32.mrb[0].mxu0
    %v242 = vadd.f32 0.0, %v241
    %243 = vdwg.mxu0
    %v246 = vrot.slane %v240, 6
    %v247 = vrot.slane %v242, 6
    %v250 = vadd.f32 %v120, %v246
    %v251 = vadd.f32 %v122, %v247
    %v252 = vxor.u32 %v250, 2147483648
    %v253 = vxor.u32 %v251, 2147483648
    %v254 = vmul.f32 %v252, 1.442695
    %v255 = vpow.pop %v254
    %v256 = vmul.f32 %v253, 1.442695
    %v257 = vpow.pop %v256
    %v258 = vadd.f32 %v255, 1.0
    %v259 = vadd.f32 %v257, 1.0
    %v260 = vrcp.pop %v258
    %v261 = vmul.f32 1.0, %v260
    %v262 = vrcp.pop %v259
    %v263 = vmul.f32 1.0, %v262
    %v264 = vmul.f32 %v263, 2.0
    %v265 = vsub.f32 %v264, 1.0
    %v267 = vrot.slane %v160, 6
    %268 = vrot.lane.b32.xlu0 %v267, 64
    %v269 = vpop.permute.xlu0 %268
    %v271 = vmul.f32 %v261, %v269
    %v272 = vmul.f32 %v261, %v265
    %274 = vrot.lane.b32.xlu0 %v272, 64
    %v275 = vpop.permute.xlu0 %274
    %v277 = vadd.f32 %v271, %v275
    %v278 = vtanh.pop %v277
    %v279 = vmul.f32 %v263, %v278
    %v281 = vrot.slane %v279, 2
    %282 = vrot.lane.b32.xlu0 %v281, 64
    %v283 = vpop.permute.xlu0 %282
    %v284 = vsel %vm170, %v283, 0
    %286 = vmatprep.subr.mxu0 %v131
    %287 = vmatpush1.msra.mxu0 %v130
    %288 = vmatprep.subr.mxu0 %v133
    %289 = vmatpush1.msra.mxu0 %v132
    %290 = vmatprep.subr.mxu0 %v135
    %291 = vmatpush1.msra.mxu0 %v134
    %292 = vmatprep.subr.mxu0 %v137
    %293 = vmatpush1.msra.mxu0 %v136
    %294 = vmatprep.subr.mxu0 %v139
    %295 = vmatpush1.msra.mxu0 %v138
    %296 = vmatprep.subr.mxu0 %v141
    %297 = vmatpush1.msra.mxu0 %v140
    %298 = vmatprep.subr.mxu0 %v143
    %299 = vmatpush1.msra.mxu0 %v142
    %300 = vmatprep.subr.mxu0 %v145
    %301 = vmatpush1.msra.mxu0 %v144
    %302 = vmatprep.subr.mxu0 0.0
    %303 = vmatpush1.msra.mxu0 0.0
    %304 = vmatprep.subr.mxu0 0.0
    %305 = vmatpush1.msra.mxu0 0.0
    %306 = vmatprep.subr.mxu0 0.0
    %307 = vmatpush1.msra.mxu0 0.0
    %308 = vmatprep.subr.mxu0 0.0
    %309 = vmatpush1.msra.mxu0 0.0
    %310 = vmatprep.subr.mxu0 0.0
    %311 = vmatpush1.msra.mxu0 0.0
    %312 = vmatprep.subr.mxu0 0.0
    %313 = vmatpush1.msra.mxu0 0.0
    %314 = vmatprep.subr.mxu0 0.0
    %315 = vmatpush1.msra.mxu0 0.0
    %316 = vmatprep.subr.mxu0 0.0
    %317 = vmatpush1.msra.mxu0 0.0
    %318 = vmatprep.subr.mxu0 0.0
    %319 = vmatpush1.msra.mxu0 0.0
    %320 = vmatprep.subr.mxu0 0.0
    %321 = vmatpush1.msra.mxu0 0.0
    %322 = vmatprep.subr.mxu0 0.0
    %323 = vmatpush1.msra.mxu0 0.0
    %324 = vmatprep.subr.mxu0 0.0
    %325 = vmatpush1.msra.mxu0 0.0
    %326 = vmatprep.subr.mxu0 0.0
    %327 = vmatpush1.msra.mxu0 0.0
    %328 = vmatprep.subr.mxu0 0.0
    %329 = vmatpush1.msra.mxu0 0.0
    %330 = vmatprep.subr.mxu0 0.0
    %331 = vmatpush1.msra.mxu0 0.0
    %332 = vmatprep.subr.mxu0 0.0
    %333 = vmatpush1.msra.mxu0 0.0
    %334 = vmatprep.subr.mxu0 0.0
    %335 = vmatpush1.msra.mxu0 0.0
    %336 = vmatprep.subr.mxu0 0.0
    %337 = vmatpush1.msra.mxu0 0.0
    %338 = vmatprep.subr.mxu0 0.0
    %339 = vmatpush1.msra.mxu0 0.0
    %340 = vmatprep.subr.mxu0 0.0
    %341 = vmatpush1.msra.mxu0 0.0
    %342 = vmatprep.subr.mxu0 0.0
    %343 = vmatpush1.msra.mxu0 0.0
    %344 = vmatprep.subr.mxu0 0.0
    %345 = vmatpush1.msra.mxu0 0.0
    %346 = vmatprep.subr.mxu0 0.0
    %347 = vmatpush1.msra.mxu0 0.0
    %348 = vmatprep.subr.mxu0 0.0
    %349 = vmatpush1.msra.mxu0 0.0
    %350 = vmatprep.mubr.f32.mxu0 0.0
    %351 = vmatmul.mubr.f32.gmra.mrb[0].mxu0 %v284
    %v352 = vpop.f32.mrb[0].mxu0
    %v353 = vadd.f32 0.0, %v352
    %v354 = vpop.f32.mrb[0].mxu0
    %v355 = vadd.f32 0.0, %v354
    %356 = vdwg.mxu0
    %v359 = vrot.slane %v353, 4
    %v360 = vrot.slane %v355, 4
    %v363 = vadd.f32 %v120, %v359
    %v364 = vadd.f32 %v122, %v360
    %v365 = vxor.u32 %v363, 2147483648
    %v366 = vxor.u32 %v364, 2147483648
    %v367 = vmul.f32 %v365, 1.442695
    %v368 = vpow.pop %v367
    %v369 = vmul.f32 %v366, 1.442695
    %v370 = vpow.pop %v369
    %v371 = vadd.f32 %v368, 1.0
    %v372 = vadd.f32 %v370, 1.0
    %v373 = vrcp.pop %v371
    %v374 = vmul.f32 1.0, %v373
    %v375 = vrcp.pop %v372
    %v376 = vmul.f32 1.0, %v375
    %v377 = vmul.f32 %v376, 2.0
    %v378 = vsub.f32 %v377, 1.0
    %v380 = vrot.slane %v277, 6
    %v382 = vmul.f32 %v374, %v380
    %v383 = vmul.f32 %v374, %v378
    %385 = vrot.lane.b32.xlu0 %v383, 64
    %v386 = vpop.permute.xlu0 %385
    %v388 = vadd.f32 %v382, %v386
    %v389 = vtanh.pop %v388
    %v390 = vmul.f32 %v376, %v389
    %v392 = vrot.slane %v390, 4
    %393 = vrot.lane.b32.xlu0 %v392, 64
    %v394 = vpop.permute.xlu0 %393
    %v395 = vsel %vm170, %v394, 0
    %397 = vmatprep.subr.mxu0 %v131
    %398 = vmatpush1.msra.mxu0 %v130
    %399 = vmatprep.subr.mxu0 %v133
    %400 = vmatpush1.msra.mxu0 %v132
    %401 = vmatprep.subr.mxu0 %v135
    %402 = vmatpush1.msra.mxu0 %v134
    %403 = vmatprep.subr.mxu0 %v137
    %404 = vmatpush1.msra.mxu0 %v136
    %405 = vmatprep.subr.mxu0 %v139
    %406 = vmatpush1.msra.mxu0 %v138
    %407 = vmatprep.subr.mxu0 %v141
    %408 = vmatpush1.msra.mxu0 %v140
    %409 = vmatprep.subr.mxu0 %v143
    %410 = vmatpush1.msra.mxu0 %v142
    %411 = vmatprep.subr.mxu0 %v145
    %412 = vmatpush1.msra.mxu0 %v144
    %413 = vmatprep.subr.mxu0 0.0
    %414 = vmatpush1.msra.mxu0 0.0
    %415 = vmatprep.subr.mxu0 0.0
    %416 = vmatpush1.msra.mxu0 0.0
    %417 = vmatprep.subr.mxu0 0.0
    %418 = vmatpush1.msra.mxu0 0.0
    %419 = vmatprep.subr.mxu0 0.0
    %420 = vmatpush1.msra.mxu0 0.0
    %421 = vmatprep.subr.mxu0 0.0
    %422 = vmatpush1.msra.mxu0 0.0
    %423 = vmatprep.subr.mxu0 0.0
    %424 = vmatpush1.msra.mxu0 0.0
    %425 = vmatprep.subr.mxu0 0.0
    %426 = vmatpush1.msra.mxu0 0.0
    %427 = vmatprep.subr.mxu0 0.0
    %428 = vmatpush1.msra.mxu0 0.0
    %429 = vmatprep.subr.mxu0 0.0
    %430 = vmatpush1.msra.mxu0 0.0
    %431 = vmatprep.subr.mxu0 0.0
    %432 = vmatpush1.msra.mxu0 0.0
    %433 = vmatprep.subr.mxu0 0.0
    %434 = vmatpush1.msra.mxu0 0.0
    %435 = vmatprep.subr.mxu0 0.0
    %436 = vmatpush1.msra.mxu0 0.0
    %437 = vmatprep.subr.mxu0 0.0
    %438 = vmatpush1.msra.mxu0 0.0
    %439 = vmatprep.subr.mxu0 0.0
    %440 = vmatpush1.msra.mxu0 0.0
    %441 = vmatprep.subr.mxu0 0.0
    %442 = vmatpush1.msra.mxu0 0.0
    %443 = vmatprep.subr.mxu0 0.0
    %444 = vmatpush1.msra.mxu0 0.0
    %445 = vmatprep.subr.mxu0 0.0
    %446 = vmatpush1.msra.mxu0 0.0
    %447 = vmatprep.subr.mxu0 0.0
    %448 = vmatpush1.msra.mxu0 0.0
    %449 = vmatprep.subr.mxu0 0.0
    %450 = vmatpush1.msra.mxu0 0.0
    %451 = vmatprep.subr.mxu0 0.0
    %452 = vmatpush1.msra.mxu0 0.0
    %453 = vmatprep.subr.mxu0 0.0
    %454 = vmatpush1.msra.mxu0 0.0
    %455 = vmatprep.subr.mxu0 0.0
    %456 = vmatpush1.msra.mxu0 0.0
    %457 = vmatprep.subr.mxu0 0.0
    %458 = vmatpush1.msra.mxu0 0.0
    %459 = vmatprep.subr.mxu0 0.0
    %460 = vmatpush1.msra.mxu0 0.0
    %461 = vmatprep.mubr.f32.mxu0 0.0
    %462 = vmatmul.mubr.f32.gmra.mrb[0].mxu0 %v395
    %v463 = vpop.f32.mrb[0].mxu0
    %v464 = vadd.f32 0.0, %v463
    %v465 = vpop.f32.mrb[0].mxu0
    %v466 = vadd.f32 0.0, %v465
    %467 = vdwg.mxu0
    %v470 = vrot.slane %v464, 2
    %v471 = vrot.slane %v466, 2
    %v474 = vadd.f32 %v120, %v470
    %v475 = vadd.f32 %v122, %v471
    %v476 = vxor.u32 %v474, 2147483648
    %v477 = vxor.u32 %v475, 2147483648
    %v478 = vmul.f32 %v476, 1.442695
    %v479 = vpow.pop %v478
    %v480 = vmul.f32 %v477, 1.442695
    %v481 = vpow.pop %v480
    %v482 = vadd.f32 %v479, 1.0
    %v483 = vadd.f32 %v481, 1.0
    %v484 = vrcp.pop %v482
    %v485 = vmul.f32 1.0, %v484
    %v486 = vrcp.pop %v483
    %v487 = vmul.f32 1.0, %v486
    %v488 = vmul.f32 %v487, 2.0
    %v489 = vsub.f32 %v488, 1.0
    %v491 = vrot.slane %v388, 6
    %v493 = vmul.f32 %v485, %v491
    %v494 = vmul.f32 %v485, %v489
    %496 = vrot.lane.b32.xlu0 %v494, 64
    %v497 = vpop.permute.xlu0 %496
    %v499 = vadd.f32 %v493, %v497
    %v500 = vtanh.pop %v499
    %v501 = vmul.f32 %v487, %v500
    %v503 = vrot.slane %v501, 6
    %504 = vrot.lane.b32.xlu0 %v503, 64
    %v505 = vpop.permute.xlu0 %504
    %v506 = vsel %vm170, %v505, 0
    %508 = vmatprep.subr.mxu0 %v131
    %509 = vmatpush1.msra.mxu0 %v130
    %510 = vmatprep.subr.mxu0 %v133
    %511 = vmatpush1.msra.mxu0 %v132
    %512 = vmatprep.subr.mxu0 %v135
    %513 = vmatpush1.msra.mxu0 %v134
    %514 = vmatprep.subr.mxu0 %v137
    %515 = vmatpush1.msra.mxu0 %v136
    %516 = vmatprep.subr.mxu0 %v139
    %517 = vmatpush1.msra.mxu0 %v138
    %518 = vmatprep.subr.mxu0 %v141
    %519 = vmatpush1.msra.mxu0 %v140
    %520 = vmatprep.subr.mxu0 %v143
    %521 = vmatpush1.msra.mxu0 %v142
    %522 = vmatprep.subr.mxu0 %v145
    %523 = vmatpush1.msra.mxu0 %v144
    %524 = vmatprep.subr.mxu0 0.0
    %525 = vmatpush1.msra.mxu0 0.0
    %526 = vmatprep.subr.mxu0 0.0
    %527 = vmatpush1.msra.mxu0 0.0
    %528 = vmatprep.subr.mxu0 0.0
    %529 = vmatpush1.msra.mxu0 0.0
    %530 = vmatprep.subr.mxu0 0.0
    %531 = vmatpush1.msra.mxu0 0.0
    %532 = vmatprep.subr.mxu0 0.0
    %533 = vmatpush1.msra.mxu0 0.0
    %534 = vmatprep.subr.mxu0 0.0
    %535 = vmatpush1.msra.mxu0 0.0
    %536 = vmatprep.subr.mxu0 0.0
    %537 = vmatpush1.msra.mxu0 0.0
    %538 = vmatprep.subr.mxu0 0.0
    %539 = vmatpush1.msra.mxu0 0.0
    %540 = vmatprep.subr.mxu0 0.0
    %541 = vmatpush1.msra.mxu0 0.0
    %542 = vmatprep.subr.mxu0 0.0
    %543 = vmatpush1.msra.mxu0 0.0
    %544 = vmatprep.subr.mxu0 0.0
    %545 = vmatpush1.msra.mxu0 0.0
    %546 = vmatprep.subr.mxu0 0.0
    %547 = vmatpush1.msra.mxu0 0.0
    %548 = vmatprep.subr.mxu0 0.0
    %549 = vmatpush1.msra.mxu0 0.0
    %550 = vmatprep.subr.mxu0 0.0
    %551 = vmatpush1.msra.mxu0 0.0
    %552 = vmatprep.subr.mxu0 0.0
    %553 = vmatpush1.msra.mxu0 0.0
    %554 = vmatprep.subr.mxu0 0.0
    %555 = vmatpush1.msra.mxu0 0.0
    %556 = vmatprep.subr.mxu0 0.0
    %557 = vmatpush1.msra.mxu0 0.0
    %558 = vmatprep.subr.mxu0 0.0
    %559 = vmatpush1.msra.mxu0 0.0
    %560 = vmatprep.subr.mxu0 0.0
    %561 = vmatpush1.msra.mxu0 0.0
    %562 = vmatprep.subr.mxu0 0.0
    %563 = vmatpush1.msra.mxu0 0.0
    %564 = vmatprep.subr.mxu0 0.0
    %565 = vmatpush1.msra.mxu0 0.0
    %566 = vmatprep.subr.mxu0 0.0
    %567 = vmatpush1.msra.mxu0 0.0
    %568 = vmatprep.subr.mxu0 0.0
    %569 = vmatpush1.msra.mxu0 0.0
    %570 = vmatprep.subr.mxu0 0.0
    %571 = vmatpush1.msra.mxu0 0.0
    %572 = vmatprep.mubr.f32.mxu0 0.0
    %573 = vmatmul.mubr.f32.gmra.mrb[0].mxu0 %v506
    %v574 = vpop.f32.mrb[0].mxu0
    %v575 = vadd.f32 0.0, %v574
    %v576 = vpop.f32.mrb[0].mxu0
    %v577 = vadd.f32 0.0, %v576
    %578 = vdwg.mxu0
    %v579 = vadd.f32 %v126, %v575
    %v580 = vadd.f32 %v128, %v577
    %v581 = vxor.u32 %v579, 2147483648
    %v582 = vxor.u32 %v580, 2147483648
    %v583 = vmul.f32 %v581, 1.442695
    %v584 = vpow.pop %v583
    %v585 = vmul.f32 %v582, 1.442695
    %v586 = vpow.pop %v585
    %v587 = vadd.f32 %v584, 1.0
    %v588 = vadd.f32 %v586, 1.0
    %v589 = vrcp.pop %v587
    %v590 = vmul.f32 1.0, %v589
    %v591 = vrcp.pop %v588
    %v592 = vmul.f32 1.0, %v591
    %v593 = vmul.f32 %v592, 2.0
    %v594 = vsub.f32 %v593, 1.0
    %v596 = vrot.slane %v499, 6
    %v598 = vmul.f32 %v590, %v596
    %v599 = vmul.f32 %v590, %v594
    %601 = vrot.lane.b32.xlu0 %v599, 64
    %v602 = vpop.permute.xlu0 %601
    %v604 = vadd.f32 %v598, %v602
    %v605 = vtanh.pop %v604
    %v606 = vmul.f32 %v592, %v605
    %608 = vrot.lane.b32.xlu0 %v606, 64
    %v609 = vpop.permute.xlu0 %608
    %v610 = vsel %vm170, %v609, 0
    %612 = vmatprep.subr.mxu0 %v131
    %613 = vmatpush1.msra.mxu0 %v130
    %614 = vmatprep.subr.mxu0 %v133
    %615 = vmatpush1.msra.mxu0 %v132
    %616 = vmatprep.subr.mxu0 %v135
    %617 = vmatpush1.msra.mxu0 %v134
    %618 = vmatprep.subr.mxu0 %v137
    %619 = vmatpush1.msra.mxu0 %v136
    %620 = vmatprep.subr.mxu0 %v139
    %621 = vmatpush1.msra.mxu0 %v138
    %622 = vmatprep.subr.mxu0 %v141
    %623 = vmatpush1.msra.mxu0 %v140
    %624 = vmatprep.subr.mxu0 %v143
    %625 = vmatpush1.msra.mxu0 %v142
    %626 = vmatprep.subr.mxu0 %v145
    %627 = vmatpush1.msra.mxu0 %v144
    %628 = vmatprep.subr.mxu0 0.0
    %629 = vmatpush1.msra.mxu0 0.0
    %630 = vmatprep.subr.mxu0 0.0
    %631 = vmatpush1.msra.mxu0 0.0
    %632 = vmatprep.subr.mxu0 0.0
    %633 = vmatpush1.msra.mxu0 0.0
    %634 = vmatprep.subr.mxu0 0.0
    %635 = vmatpush1.msra.mxu0 0.0
    %636 = vmatprep.subr.mxu0 0.0
    %637 = vmatpush1.msra.mxu0 0.0
    %638 = vmatprep.subr.mxu0 0.0
    %639 = vmatpush1.msra.mxu0 0.0
    %640 = vmatprep.subr.mxu0 0.0
    %641 = vmatpush1.msra.mxu0 0.0
    %642 = vmatprep.subr.mxu0 0.0
    %643 = vmatpush1.msra.mxu0 0.0
    %644 = vmatprep.subr.mxu0 0.0
    %645 = vmatpush1.msra.mxu0 0.0
    %646 = vmatprep.subr.mxu0 0.0
    %647 = vmatpush1.msra.mxu0 0.0
    %648 = vmatprep.subr.mxu0 0.0
    %649 = vmatpush1.msra.mxu0 0.0
    %650 = vmatprep.subr.mxu0 0.0
    %651 = vmatpush1.msra.mxu0 0.0
    %652 = vmatprep.subr.mxu0 0.0
    %653 = vmatpush1.msra.mxu0 0.0
    %654 = vmatprep.subr.mxu0 0.0
    %655 = vmatpush1.msra.mxu0 0.0
    %656 = vmatprep.subr.mxu0 0.0
    %657 = vmatpush1.msra.mxu0 0.0
    %658 = vmatprep.subr.mxu0 0.0
    %659 = vmatpush1.msra.mxu0 0.0
    %660 = vmatprep.subr.mxu0 0.0
    %661 = vmatpush1.msra.mxu0 0.0
    %662 = vmatprep.subr.mxu0 0.0
    %663 = vmatpush1.msra.mxu0 0.0
    %664 = vmatprep.subr.mxu0 0.0
    %665 = vmatpush1.msra.mxu0 0.0
    %666 = vmatprep.subr.mxu0 0.0
    %667 = vmatpush1.msra.mxu0 0.0
    %668 = vmatprep.subr.mxu0 0.0
    %669 = vmatpush1.msra.mxu0 0.0
    %670 = vmatprep.subr.mxu0 0.0
    %671 = vmatpush1.msra.mxu0 0.0
    %672 = vmatprep.subr.mxu0 0.0
    %673 = vmatpush1.msra.mxu0 0.0
    %674 = vmatprep.subr.mxu0 0.0
    %675 = vmatpush1.msra.mxu0 0.0
    %676 = vmatprep.mubr.f32.mxu0 0.0
    %677 = vmatmul.mubr.f32.gmra.mrb[0].mxu0 %v610
    %v678 = vpop.f32.mrb[0].mxu0
    %v679 = vadd.f32 0.0, %v678
    %v680 = vpop.f32.mrb[0].mxu0
    %v681 = vadd.f32 0.0, %v680
    %682 = vdwg.mxu0
    %v685 = vrot.slane %v679, 6
    %v686 = vrot.slane %v681, 6
    %v689 = vadd.f32 %v126, %v685
    %v690 = vadd.f32 %v128, %v686
    %v691 = vxor.u32 %v689, 2147483648
    %v692 = vxor.u32 %v690, 2147483648
    %v693 = vmul.f32 %v691, 1.442695
    %v694 = vpow.pop %v693
    %v695 = vmul.f32 %v692, 1.442695
    %v696 = vpow.pop %v695
    %v697 = vadd.f32 %v694, 1.0
    %v698 = vadd.f32 %v696, 1.0
    %v699 = vrcp.pop %v697
    %v700 = vmul.f32 1.0, %v699
    %v701 = vrcp.pop %v698
    %v702 = vmul.f32 1.0, %v701
    %v703 = vmul.f32 %v702, 2.0
    %v704 = vsub.f32 %v703, 1.0
    %v706 = vrot.slane %v604, 6
    %v708 = vmul.f32 %v700, %v706
    %v709 = vmul.f32 %v700, %v704
    %711 = vrot.lane.b32.xlu0 %v709, 64
    %v712 = vpop.permute.xlu0 %711
    %v714 = vadd.f32 %v708, %v712
    %v715 = vtanh.pop %v714
    %v716 = vmul.f32 %v702, %v715
    %v718 = vrot.slane %v716, 2
    %719 = vrot.lane.b32.xlu0 %v718, 64
    %v720 = vpop.permute.xlu0 %719
    %v721 = vsel %vm170, %v720, 0
    %723 = vmatprep.subr.mxu0 %v131
    %724 = vmatpush1.msra.mxu0 %v130
    %725 = vmatprep.subr.mxu0 %v133
    %726 = vmatpush1.msra.mxu0 %v132
    %727 = vmatprep.subr.mxu0 %v135
    %728 = vmatpush1.msra.mxu0 %v134
    %729 = vmatprep.subr.mxu0 %v137
    %730 = vmatpush1.msra.mxu0 %v136
    %731 = vmatprep.subr.mxu0 %v139
    %732 = vmatpush1.msra.mxu0 %v138
    %733 = vmatprep.subr.mxu0 %v141
    %734 = vmatpush1.msra.mxu0 %v140
    %735 = vmatprep.subr.mxu0 %v143
    %736 = vmatpush1.msra.mxu0 %v142
    %737 = vmatprep.subr.mxu0 %v145
    %738 = vmatpush1.msra.mxu0 %v144
    %739 = vmatprep.subr.mxu0 0.0
    %740 = vmatpush1.msra.mxu0 0.0
    %741 = vmatprep.subr.mxu0 0.0
    %742 = vmatpush1.msra.mxu0 0.0
    %743 = vmatprep.subr.mxu0 0.0
    %744 = vmatpush1.msra.mxu0 0.0
    %745 = vmatprep.subr.mxu0 0.0
    %746 = vmatpush1.msra.mxu0 0.0
    %747 = vmatprep.subr.mxu0 0.0
    %748 = vmatpush1.msra.mxu0 0.0
    %749 = vmatprep.subr.mxu0 0.0
    %750 = vmatpush1.msra.mxu0 0.0
    %751 = vmatprep.subr.mxu0 0.0
    %752 = vmatpush1.msra.mxu0 0.0
    %753 = vmatprep.subr.mxu0 0.0
    %754 = vmatpush1.msra.mxu0 0.0
    %755 = vmatprep.subr.mxu0 0.0
    %756 = vmatpush1.msra.mxu0 0.0
    %757 = vmatprep.subr.mxu0 0.0
    %758 = vmatpush1.msra.mxu0 0.0
    %759 = vmatprep.subr.mxu0 0.0
    %760 = vmatpush1.msra.mxu0 0.0
    %761 = vmatprep.subr.mxu0 0.0
    %762 = vmatpush1.msra.mxu0 0.0
    %763 = vmatprep.subr.mxu0 0.0
    %764 = vmatpush1.msra.mxu0 0.0
    %765 = vmatprep.subr.mxu0 0.0
    %766 = vmatpush1.msra.mxu0 0.0
    %767 = vmatprep.subr.mxu0 0.0
    %768 = vmatpush1.msra.mxu0 0.0
    %769 = vmatprep.subr.mxu0 0.0
    %770 = vmatpush1.msra.mxu0 0.0
    %771 = vmatprep.subr.mxu0 0.0
    %772 = vmatpush1.msra.mxu0 0.0
    %773 = vmatprep.subr.mxu0 0.0
    %774 = vmatpush1.msra.mxu0 0.0
    %775 = vmatprep.subr.mxu0 0.0
    %776 = vmatpush1.msra.mxu0 0.0
    %777 = vmatprep.subr.mxu0 0.0
    %778 = vmatpush1.msra.mxu0 0.0
    %779 = vmatprep.subr.mxu0 0.0
    %780 = vmatpush1.msra.mxu0 0.0
    %781 = vmatprep.subr.mxu0 0.0
    %782 = vmatpush1.msra.mxu0 0.0
    %783 = vmatprep.subr.mxu0 0.0
    %784 = vmatpush1.msra.mxu0 0.0
    %785 = vmatprep.subr.mxu0 0.0
    %786 = vmatpush1.msra.mxu0 0.0
    %787 = vmatprep.mubr.f32.mxu0 0.0
    %788 = vmatmul.mubr.f32.gmra.mrb[0].mxu0 %v721
    %v789 = vpop.f32.mrb[0].mxu0
    %v790 = vadd.f32 0.0, %v789
    %v791 = vpop.f32.mrb[0].mxu0
    %v792 = vadd.f32 0.0, %v791
    %793 = vdwg.mxu0
    %v796 = vrot.slane %v790, 4
    %v797 = vrot.slane %v792, 4
    %v800 = vadd.f32 %v126, %v796
    %v801 = vadd.f32 %v128, %v797
    %v802 = vxor.u32 %v800, 2147483648
    %v803 = vxor.u32 %v801, 2147483648
    %v804 = vmul.f32 %v802, 1.442695
    %v805 = vpow.pop %v804
    %v806 = vmul.f32 %v803, 1.442695
    %v807 = vpow.pop %v806
    %v808 = vadd.f32 %v805, 1.0
    %v809 = vadd.f32 %v807, 1.0
    %v810 = vrcp.pop %v808
    %v811 = vmul.f32 1.0, %v810
    %v812 = vrcp.pop %v809
    %v813 = vmul.f32 1.0, %v812
    %v814 = vmul.f32 %v813, 2.0
    %v815 = vsub.f32 %v814, 1.0
    %v817 = vrot.slane %v714, 6
    %v819 = vmul.f32 %v811, %v817
    %v820 = vmul.f32 %v811, %v815
    %822 = vrot.lane.b32.xlu0 %v820, 64
    %v823 = vpop.permute.xlu0 %822
    %v825 = vadd.f32 %v819, %v823
    %v826 = vtanh.pop %v825
    %v827 = vmul.f32 %v813, %v826
    %v829 = vrot.slane %v827, 4
    %830 = vrot.lane.b32.xlu0 %v829, 64
    %v831 = vpop.permute.xlu0 %830
    %v832 = vsel %vm170, %v831, 0
    %834 = vmatprep.subr.mxu0 %v131
    %835 = vmatpush1.msra.mxu0 %v130
    %836 = vmatprep.subr.mxu0 %v133
    %837 = vmatpush1.msra.mxu0 %v132
    %838 = vmatprep.subr.mxu0 %v135
    %839 = vmatpush1.msra.mxu0 %v134
    %840 = vmatprep.subr.mxu0 %v137
    %841 = vmatpush1.msra.mxu0 %v136
    %842 = vmatprep.subr.mxu0 %v139
    %843 = vmatpush1.msra.mxu0 %v138
    %844 = vmatprep.subr.mxu0 %v141
    %845 = vmatpush1.msra.mxu0 %v140
    %846 = vmatprep.subr.mxu0 %v143
    %847 = vmatpush1.msra.mxu0 %v142
    %848 = vmatprep.subr.mxu0 %v145
    %849 = vmatpush1.msra.mxu0 %v144
    %850 = vmatprep.subr.mxu0 0.0
    %851 = vmatpush1.msra.mxu0 0.0
    %852 = vmatprep.subr.mxu0 0.0
    %853 = vmatpush1.msra.mxu0 0.0
    %854 = vmatprep.subr.mxu0 0.0
    %855 = vmatpush1.msra.mxu0 0.0
    %856 = vmatprep.subr.mxu0 0.0
    %857 = vmatpush1.msra.mxu0 0.0
    %858 = vmatprep.subr.mxu0 0.0
    %859 = vmatpush1.msra.mxu0 0.0
    %860 = vmatprep.subr.mxu0 0.0
    %861 = vmatpush1.msra.mxu0 0.0
    %862 = vmatprep.subr.mxu0 0.0
    %863 = vmatpush1.msra.mxu0 0.0
    %864 = vmatprep.subr.mxu0 0.0
    %865 = vmatpush1.msra.mxu0 0.0
    %866 = vmatprep.subr.mxu0 0.0
    %867 = vmatpush1.msra.mxu0 0.0
    %868 = vmatprep.subr.mxu0 0.0
    %869 = vmatpush1.msra.mxu0 0.0
    %870 = vmatprep.subr.mxu0 0.0
    %871 = vmatpush1.msra.mxu0 0.0
    %872 = vmatprep.subr.mxu0 0.0
    %873 = vmatpush1.msra.mxu0 0.0
    %874 = vmatprep.subr.mxu0 0.0
    %875 = vmatpush1.msra.mxu0 0.0
    %876 = vmatprep.subr.mxu0 0.0
    %877 = vmatpush1.msra.mxu0 0.0
    %878 = vmatprep.subr.mxu0 0.0
    %879 = vmatpush1.msra.mxu0 0.0
    %880 = vmatprep.subr.mxu0 0.0
    %881 = vmatpush1.msra.mxu0 0.0
    %882 = vmatprep.subr.mxu0 0.0
    %883 = vmatpush1.msra.mxu0 0.0
    %884 = vmatprep.subr.mxu0 0.0
    %885 = vmatpush1.msra.mxu0 0.0
    %886 = vmatprep.subr.mxu0 0.0
    %887 = vmatpush1.msra.mxu0 0.0
    %888 = vmatprep.subr.mxu0 0.0
    %889 = vmatpush1.msra.mxu0 0.0
    %890 = vmatprep.subr.mxu0 0.0
    %891 = vmatpush1.msra.mxu0 0.0
    %892 = vmatprep.subr.mxu0 0.0
    %893 = vmatpush1.msra.mxu0 0.0
    %894 = vmatprep.subr.mxu0 0.0
    %895 = vmatpush1.msra.mxu0 0.0
    %896 = vmatprep.subr.mxu0 0.0
    %897 = vmatpush1.msra.mxu0 0.0
    %898 = vmatprep.mubr.f32.mxu0 0.0
    %899 = vmatmul.mubr.f32.gmra.mrb[0].mxu0 %v832
    %v900 = vpop.f32.mrb[0].mxu0
    %v901 = vadd.f32 0.0, %v900
    %v902 = vpop.f32.mrb[0].mxu0
    %v903 = vadd.f32 0.0, %v902
    %904 = vdwg.mxu0
    %v907 = vrot.slane %v901, 2
    %v908 = vrot.slane %v903, 2
    %v911 = vadd.f32 %v126, %v907
    %v912 = vadd.f32 %v128, %v908
    %v913 = vxor.u32 %v911, 2147483648
    %v914 = vxor.u32 %v912, 2147483648
    %v915 = vmul.f32 %v913, 1.442695
    %v916 = vpow.pop %v915
    %v917 = vmul.f32 %v914, 1.442695
    %v918 = vpow.pop %v917
    %v919 = vadd.f32 %v916, 1.0
    %v920 = vadd.f32 %v918, 1.0
    %v921 = vrcp.pop %v919
    %v922 = vmul.f32 1.0, %v921
    %v923 = vrcp.pop %v920
    %v924 = vmul.f32 1.0, %v923
    %v925 = vmul.f32 %v924, 2.0
    %v926 = vsub.f32 %v925, 1.0
    %v928 = vrot.slane %v825, 6
    %v930 = vmul.f32 %v922, %v928
    %v931 = vmul.f32 %v922, %v926
    %933 = vrot.lane.b32.xlu0 %v931, 64
    %v934 = vpop.permute.xlu0 %933
    %v936 = vadd.f32 %v930, %v934
    %v937 = vtanh.pop %v936
    %v938 = vmul.f32 %v924, %v937
    %v941 = vrot.slane %v938, 6
    %942 = vrot.lane.b32.xlu0 %v941, 64
    %v943 = vpop.permute.xlu0 %942
    %v945 = vsel %vm46, %v169, %v943
    %946 = vrot.lane.b32.xlu0 %v279, 64
    %v947 = vpop.permute.xlu0 %946
    %v949 = vrot.slane %v827, 2
    %950 = vrot.lane.b32.xlu0 %v949, 64
    %v951 = vpop.permute.xlu0 %950
    %v953 = vsel %vm46, %v947, %v951
    %954 = vrot.lane.b32.xlu0 %v390, 64
    %v955 = vpop.permute.xlu0 %954
    %v957 = vrot.slane %v716, 6
    %958 = vrot.lane.b32.xlu0 %v957, 64
    %v959 = vpop.permute.xlu0 %958
    %v961 = vsel %vm46, %v955, %v959
    %962 = vrot.lane.b32.xlu0 %v501, 64
    %v963 = vpop.permute.xlu0 %962
    %v965 = vrot.slane %v606, 2
    %966 = vrot.lane.b32.xlu0 %v965, 64
    %v967 = vpop.permute.xlu0 %966
    %v969 = vsel %vm46, %v963, %v967
    %v972 = vsel %vm46, %v609, %v505
    %973 = vrot.lane.b32.xlu0 %v716, 64
    %v974 = vpop.permute.xlu0 %973
    %v976 = vrot.slane %v390, 2
    %977 = vrot.lane.b32.xlu0 %v976, 64
    %v978 = vpop.permute.xlu0 %977
    %v980 = vsel %vm46, %v974, %v978
    %981 = vrot.lane.b32.xlu0 %v827, 64
    %v982 = vpop.permute.xlu0 %981
    %v984 = vrot.slane %v279, 6
    %985 = vrot.lane.b32.xlu0 %v984, 64
    %v986 = vpop.permute.xlu0 %985
    %v988 = vsel %vm46, %v982, %v986
    %989 = vrot.lane.b32.xlu0 %v938, 64
    %v990 = vpop.permute.xlu0 %989
    %v992 = vrot.slane %v166, 2
    %993 = vrot.lane.b32.xlu0 %v992, 64
    %v994 = vpop.permute.xlu0 %993
    %v996 = vsel %vm46, %v990, %v994
    %vm997 = vcmask 1041408
    %v998 = vsel %vm997, %v945, %v953
    %vm999 = vcmask 1043456
    %v1000 = vsel %vm999, %v998, %v961
    %vm1001 = vcmask 1045504
    %v1002 = vsel %vm1001, %v1000, %v969
    %v1003 = vsel %vm997, %v972, %v980
    %v1004 = vsel %vm999, %v1003, %v988
    %v1005 = vsel %vm1001, %v1004, %v996
    %v1006 = vld [vmem:[%s4] sm:$0xff]
    %v1007 = vld [vmem:[%s4 + $0x8] sm:$0xff]
    %v1008 = vld [vmem:[%s4 + $0x10] sm:$0xff]
    %v1009 = vld [vmem:[%s4 + $0x18] sm:$0xff]
    %v1010 = vld [vmem:[%s4 + $0x20] sm:$0xff]
    %v1011 = vld [vmem:[%s4 + $0x28] sm:$0xff]
    %v1012 = vld [vmem:[%s4 + $0x30] sm:$0xff]
    %v1013 = vld [vmem:[%s4 + $0x38] sm:$0xff]
    %v1014 = vld [vmem:[%s5] sm:$0x1]
    %v1016 = vlaneseq
    %v1017 = vshrl.u32 %v1016, 7
    %v1018 = vsub.s32 0, %v1017
    %v1019 = vrot.slane %v1014, %v1018
    %v1022 = vsel %vm170, %v1002, 0
    %v1025 = vsel %vm170, %v1005, 0
    %1027 = vmatprep.subr.mxu0 0.0
    %1028 = vmatpush1.msra.mxu0 %v1006
    %1029 = vmatprep.subr.mxu0 0.0
    %1030 = vmatpush1.msra.mxu0 %v1007
    %1031 = vmatprep.subr.mxu0 0.0
    %1032 = vmatpush1.msra.mxu0 %v1008
    %1033 = vmatprep.subr.mxu0 0.0
    %1034 = vmatpush1.msra.mxu0 %v1009
    %1035 = vmatprep.subr.mxu0 0.0
    %1036 = vmatpush1.msra.mxu0 %v1010
    %1037 = vmatprep.subr.mxu0 0.0
    %1038 = vmatpush1.msra.mxu0 %v1011
    %1039 = vmatprep.subr.mxu0 0.0
    %1040 = vmatpush1.msra.mxu0 %v1012
    %1041 = vmatprep.subr.mxu0 0.0
    %1042 = vmatpush1.msra.mxu0 %v1013
    %1043 = vmatprep.subr.mxu0 0.0
    %1044 = vmatpush1.msra.mxu0 0.0
    %1045 = vmatprep.subr.mxu0 0.0
    %1046 = vmatpush1.msra.mxu0 0.0
    %1047 = vmatprep.subr.mxu0 0.0
    %1048 = vmatpush1.msra.mxu0 0.0
    %1049 = vmatprep.subr.mxu0 0.0
    %1050 = vmatpush1.msra.mxu0 0.0
    %1051 = vmatprep.subr.mxu0 0.0
    %1052 = vmatpush1.msra.mxu0 0.0
    %1053 = vmatprep.subr.mxu0 0.0
    %1054 = vmatpush1.msra.mxu0 0.0
    %1055 = vmatprep.subr.mxu0 0.0
    %1056 = vmatpush1.msra.mxu0 0.0
    %1057 = vmatprep.subr.mxu0 0.0
    %1058 = vmatpush1.msra.mxu0 0.0
    %1059 = vmatprep.subr.mxu0 0.0
    %1060 = vmatpush1.msra.mxu0 0.0
    %1061 = vmatprep.subr.mxu0 0.0
    %1062 = vmatpush1.msra.mxu0 0.0
    %1063 = vmatprep.subr.mxu0 0.0
    %1064 = vmatpush1.msra.mxu0 0.0
    %1065 = vmatprep.subr.mxu0 0.0
    %1066 = vmatpush1.msra.mxu0 0.0
    %1067 = vmatprep.subr.mxu0 0.0
    %1068 = vmatpush1.msra.mxu0 0.0
    %1069 = vmatprep.subr.mxu0 0.0
    %1070 = vmatpush1.msra.mxu0 0.0
    %1071 = vmatprep.subr.mxu0 0.0
    %1072 = vmatpush1.msra.mxu0 0.0
    %1073 = vmatprep.subr.mxu0 0.0
    %1074 = vmatpush1.msra.mxu0 0.0
    %1075 = vmatprep.subr.mxu0 0.0
    %1076 = vmatpush1.msra.mxu0 0.0
    %1077 = vmatprep.subr.mxu0 0.0
    %1078 = vmatpush1.msra.mxu0 0.0
    %1079 = vmatprep.subr.mxu0 0.0
    %1080 = vmatpush1.msra.mxu0 0.0
    %1081 = vmatprep.subr.mxu0 0.0
    %1082 = vmatpush1.msra.mxu0 0.0
    %1083 = vmatprep.subr.mxu0 0.0
    %1084 = vmatpush1.msra.mxu0 0.0
    %1085 = vmatprep.subr.mxu0 0.0
    %1086 = vmatpush1.msra.mxu0 0.0
    %1087 = vmatprep.subr.mxu0 0.0
    %1088 = vmatpush1.msra.mxu0 0.0
    %1089 = vmatprep.subr.mxu0 0.0
    %1090 = vmatpush1.msra.mxu0 0.0
    %1091 = vmatprep.mubr.f32.mxu0 0.0
    %1092 = vmatmul.mubr.f32.gmra.mrb[0].mxu0 %v1022
    %v1093 = vpop.f32.mrb[0].mxu0
    %v1094 = vadd.f32 %v1019, %v1093
    %v1095 = vpop.f32.mrb[0].mxu0
    %1096 = vmatprep.mubr.f32.mxu0 0.0
    %1097 = vmatmul.mubr.f32.gmra.mrb[0].mxu0 %v1025
    %v1098 = vpop.f32.mrb[0].mxu0
    %v1099 = vadd.f32 %v1019, %v1098
    %v1100 = vpop.f32.mrb[0].mxu0
    %1101 = vdwg.mxu0
    %vm1102 = vcmask 64512
    %1103 = vst.msk [vmem:[#allocation2] sm:$0xff] %vm1102, %v1094
    %1104 = vst.msk [vmem:[#allocation2 + $0x8] sm:$0xff] %vm1102, %v1099
    // Predicated region
    $region26: #{bilstm_forward.1} parent=1 // pred_check
      _
    $region27: #{bilstm_forward.1} parent=1 // pred_check_branch
      %1106 = sbr.rel (0) target = $region29
    $region28: #{bilstm_forward.1} parent=1 // pred_region
      %s1108 = ssub.s32 256, 256
      %1109 = vsyncadd [#allocation3], %s1108
      %s1110 = sshll.u32 [#allocation2], 4
      %s1111 = int_to_ptr.vmem [resolvable:$true] %s1110
      %1116 = dma.vmem_to_hbm [thread:$0]  %s1111, 256, %s6, [#allocation3], 128, 128, 8
    $region29: #{bilstm_forward.1} parent=1 // pred_fallthru
      _
    // Predicated region
    $region30: #{bilstm_forward.1} parent=1 // pred_check
      _
    $region31: #{bilstm_forward.1} parent=1 // pred_check_branch
      %1118 = sbr.rel (0) target = $region33
    $region32: #{bilstm_forward.1} parent=1 // pred_region
      %1119 = dma.done [#allocation3], 256
    $region33: #{bilstm_forward.1} parent=1 // pred_fallthru
      _
    %1120 = vsyncpa [#allocation3], 1

</llo_original>
